<compile_context>
chip_gen: v5e
topology: v5e:2x2
jax: 0.10.0
libtpu: 0.0.40
codegen_flags: <defaults>
</compile_context>

<pallas_src>
import functools
import math

import jax
import jax.numpy as jnp
from jax import lax
from jax.experimental import pallas as pl
from jax.experimental.pallas import tpu as pltpu


_MASK_VALUE = -0.5 * float(jnp.finfo(jnp.float32).max)
_MIB = 1024 * 1024


def _pick_tile(n, preferred):
    """Largest tile <= preferred that divides n and is a multiple of 8 (else n)."""
    if n <= preferred:
        return n
    for t in range(preferred, 7, -1):
        if n % t == 0 and t % 8 == 0:
            return t
    return n


def _vmem_limit(est_bytes):
    """Scoped-VMEM limit: generous margin over the estimate, capped at 64 MiB
    (v7x physical VMEM), floored at 16 MiB (>= every generation's default)."""
    return int(min(max(2 * est_bytes + 4 * _MIB, 16 * _MIB), 64 * _MIB))


def _vmem_capacity_bytes():
    """Physical VMEM of the current part; conservative fallback (v7x) if the
    trace-time query is unavailable."""
    try:
        return int(pltpu.get_tpu_info().vmem_capacity_bytes)
    except Exception:
        return 64 * _MIB


# ----------------------------------------------------------------------------
# Projection kernels (tiled, pipelined; weights kept in nn.Linear layout)
# ----------------------------------------------------------------------------
_DN_LAST_LAST = (((1,), (1,)), ((), ()))   # contract x's last dim with W's last dim


def _qkv_proj_kernel(q_ref, k_ref, v_ref, wq_ref, wk_ref, wv_ref,
                     qo_ref, ko_ref, vo_ref, *, scale):
    """Fused Q/K/V projection for one row tile.  Weights are (out, in); the
    MXU takes the transposed operand natively so no host transpose is needed.
    The attention scale is folded into the Q output (f32, then cast)."""
    qo_ref[...] = (lax.dot_general(q_ref[...], wq_ref[...], _DN_LAST_LAST,
                                   preferred_element_type=jnp.float32)
                   * scale).astype(qo_ref.dtype)
    ko_ref[...] = lax.dot_general(k_ref[...], wk_ref[...], _DN_LAST_LAST,
                                  preferred_element_type=jnp.float32
                                  ).astype(ko_ref.dtype)
    vo_ref[...] = lax.dot_general(v_ref[...], wv_ref[...], _DN_LAST_LAST,
                                  preferred_element_type=jnp.float32
                                  ).astype(vo_ref.dtype)


def _linear_kernel(x_ref, w_ref, o_ref):
    """o = x @ W.T with W in nn.Linear (out, in) layout."""
    o_ref[...] = lax.dot_general(x_ref[...], w_ref[...], _DN_LAST_LAST,
                                 preferred_element_type=jnp.float32
                                 ).astype(o_ref.dtype)


def _fused_qkv_projection(q2d, k2d, v2d, w_q, w_k, w_v, *, scale, out_dtype):
    """q2d/k2d/v2d: (N, D); w_*: (D, D) nn.Linear layout -> three (N, D) bf16."""
    n, d = q2d.shape
    tm = _pick_tile(n, 512)
    row_in = pl.BlockSpec((tm, d), lambda i: (i, 0))
    row_out = pl.BlockSpec((tm, d), lambda i: (i, 0))
    w_spec = pl.BlockSpec((d, d), lambda i: (0, 0))

    in_item = q2d.dtype.itemsize
    out_item = jnp.dtype(out_dtype).itemsize
    cost = pl.CostEstimate(
        flops=6 * n * d * d,
        transcendentals=0,
        bytes_accessed=int(3 * n * d * in_item + 3 * d * d * in_item
                           + 3 * n * d * out_item),
    )
    est = 2 * (3 * tm * d * in_item + 3 * d * d * in_item + 3 * tm * d * out_item)
    return pl.pallas_call(
        functools.partial(_qkv_proj_kernel, scale=scale),
        grid_spec=pltpu.PrefetchScalarGridSpec(
            num_scalar_prefetch=0,
            grid=(n // tm,),
            in_specs=[row_in, row_in, row_in, w_spec, w_spec, w_spec],
            out_specs=[row_out, row_out, row_out],
        ),
        out_shape=[jax.ShapeDtypeStruct((n, d), out_dtype)] * 3,
        compiler_params=pltpu.CompilerParams(
            dimension_semantics=("parallel",),
            vmem_limit_bytes=_vmem_limit(est)),
        cost_estimate=cost,
    )(q2d, k2d, v2d, w_q, w_k, w_v)


def _linear(x2d, w):
    """x2d: (N, D_in), w: (D_out, D_in) nn.Linear layout -> (N, D_out)."""
    n, d_in = x2d.shape
    d_out = w.shape[0]
    tm = _pick_tile(n, 512)
    x_item = x2d.dtype.itemsize
    w_item = w.dtype.itemsize
    cost = pl.CostEstimate(
        flops=2 * n * d_in * d_out,
        transcendentals=0,
        bytes_accessed=int(n * d_in * x_item + d_in * d_out * w_item
                           + n * d_out * x_item),
    )
    est = 2 * (tm * d_in * x_item + d_in * d_out * w_item + tm * d_out * x_item)
    return pl.pallas_call(
        _linear_kernel,
        grid_spec=pltpu.PrefetchScalarGridSpec(
            num_scalar_prefetch=0,
            grid=(n // tm,),
            in_specs=[pl.BlockSpec((tm, d_in), lambda i: (i, 0)),
                      pl.BlockSpec((d_out, d_in), lambda i: (0, 0))],
            out_specs=pl.BlockSpec((tm, d_out), lambda i: (i, 0)),
        ),
        out_shape=jax.ShapeDtypeStruct((n, d_out), x2d.dtype),
        compiler_params=pltpu.CompilerParams(
            dimension_semantics=("parallel",),
            vmem_limit_bytes=_vmem_limit(est)),
        cost_estimate=cost,
    )(x2d, w)


# ----------------------------------------------------------------------------
# Flash-style multi-head attention kernel (heads handled inside the kernel)
# ----------------------------------------------------------------------------
def _flash_mha_kernel(q_ref, k_ref, v_ref, o_ref, m_sc, l_sc, acc_sc, *,
                      num_heads, d_k, masked, tq, tkv):
    """One (batch, q-tile, kv-tile) grid step.

    q_ref: (1, tq, D) bf16 (already scaled by d_k^-0.5), k_ref/v_ref:
    (1, tkv, D) bf16, o_ref: (1, tq, D).  Scratch: m_sc/l_sc (H, tq, 1) f32,
    acc_sc (H, tq, d_k) f32 — online softmax state persisted across the kv
    grid axis (last axis, "arbitrary").
    """
    qi = pl.program_id(1)
    ki = pl.program_id(2)
    nk = pl.num_programs(2)

    @pl.when(ki == 0)
    def _init():
        m_sc[...] = jnp.full_like(m_sc, -jnp.inf)
        l_sc[...] = jnp.zeros_like(l_sc)
        acc_sc[...] = jnp.zeros_like(acc_sc)

    def _body(apply_mask):
        if apply_mask:
            q_pos = qi * tq + lax.broadcasted_iota(jnp.int32, (tq, tkv), 0)
            k_pos = ki * tkv + lax.broadcasted_iota(jnp.int32, (tq, tkv), 1)
            keep = k_pos <= q_pos

        # TODO(synk): if d_k >= 128 move heads to a grid axis; at small d_k the
        # in-kernel loop keeps the lane-dense D-wide output store.
        for h in range(num_heads):
            lo = h * d_k
            hi = lo + d_k
            q_h = q_ref[0, :, lo:hi]          # (tq, d_k)  bf16
            k_h = k_ref[0, :, lo:hi]          # (tkv, d_k) bf16
            v_h = v_ref[0, :, lo:hi]          # (tkv, d_k) bf16

            # scores: bf16 operands, f32 accumulation; contract on last dims.
            s = lax.dot_general(q_h, k_h, (((1,), (1,)), ((), ())),
                                preferred_element_type=jnp.float32)  # (tq, tkv)

            if apply_mask:
                # Finite large-negative mask; with causal masking every row has
                # at least one valid entry in the first kv tile, so the online
                # softmax never sees an all-masked processed row.
                s = jnp.where(keep, s, _MASK_VALUE)

            m_prev = m_sc[h]                                   # (tq, 1)
            m_new = jnp.maximum(m_prev, jnp.max(s, axis=-1, keepdims=True))
            alpha = jnp.exp(m_prev - m_new)
            p = jnp.exp(s - m_new)                             # (tq, tkv) f32

            l_sc[h] = alpha * l_sc[h] + jnp.sum(p, axis=-1, keepdims=True)
            acc_sc[h] = alpha * acc_sc[h] + lax.dot_general(
                p.astype(v_h.dtype), v_h, (((1,), (0,)), ((), ())),
                preferred_element_type=jnp.float32)
            m_sc[h] = m_new

    if masked:
        q_last = qi * tq + (tq - 1)
        k_first = ki * tkv
        k_last = k_first + (tkv - 1)
        # Interior tiles: entirely at-or-below the diagonal -> no mask math.
        interior = k_last <= qi * tq
        # Diagonal-straddling tiles: partially visible -> apply the mask.
        straddle = jnp.logical_and(k_first <= q_last,
                                   jnp.logical_not(interior))
        pl.when(interior)(lambda: _body(False))
        pl.when(straddle)(lambda: _body(True))
        # Tiles entirely above the diagonal are skipped (and their K/V DMA is
        # elided by the clamped index_map in _flash_attention).
    else:
        _body(False)

    @pl.when(ki == nk - 1)
    def _epilogue():
        for h in range(num_heads):
            lo = h * d_k
            inv_l = pl.reciprocal(l_sc[h], approx=True)        # EUP slot
            # Direct per-head slice store into the resident output block — the
            # HBM writeback remains one lane-dense (tq, D) DMA, no concat copy.
            o_ref[0, :, lo:lo + d_k] = (acc_sc[h] * inv_l).astype(o_ref.dtype)


def _flash_attention(qp, kp, vp, *, num_heads, masked, out_dtype):
    B, S, D = qp.shape
    d_k = D // num_heads

    # Generation-aware q tile: on 128-MiB-VMEM parts (v5e/v6e) a bigger q tile
    # halves K/V re-streaming from HBM; on v7x (64 MiB) stay at 256.
    big_vmem = _vmem_capacity_bytes() >= 128 * _MIB
    tq = _pick_tile(S, 512 if big_vmem else 256)
    tkv = _pick_tile(S, 256)

    if masked:
        # Clamp the kv block index so tiles entirely above the causal diagonal
        # map to the same block as the previous step -> the auto-pipeline
        # skips their HBM DMA (pl.when alone only skips the compute).
        def kv_map(b, qi, ki):
            return (b, jnp.minimum(ki, (qi * tq + tq - 1) // tkv), 0)
    else:
        def kv_map(b, qi, ki):
            return (b, ki, 0)

    qkv_item = qp.dtype.itemsize                 # bf16
    out_item = jnp.dtype(out_dtype).itemsize
    n_kv_passes = max(1, S // tq)                # K/V re-read once per q tile
    cost = pl.CostEstimate(
        flops=4 * B * S * S * D,
        transcendentals=B * num_heads * S * S,
        bytes_accessed=int(B * S * D * (qkv_item                       # Q once
                                        + 2 * n_kv_passes * qkv_item   # K, V
                                        + out_item)),                  # O once
    )
    est = (2 * (tq * D * qkv_item + 2 * tkv * D * qkv_item + tq * D * out_item)
           + num_heads * tq * (2 * 4 + 4 * d_k)      # m/l/acc scratch
           + 4 * tq * tkv * 4)                       # score/prob temporaries

    kernel = functools.partial(
        _flash_mha_kernel, num_heads=num_heads, d_k=d_k,
        masked=masked, tq=tq, tkv=tkv)
    return pl.pallas_call(
        kernel,
        grid_spec=pltpu.PrefetchScalarGridSpec(
            num_scalar_prefetch=0,
            grid=(B, S // tq, S // tkv),
            in_specs=[
                pl.BlockSpec((1, tq, D), lambda b, qi, ki: (b, qi, 0)),
                pl.BlockSpec((1, tkv, D), kv_map),
                pl.BlockSpec((1, tkv, D), kv_map),
            ],
            out_specs=pl.BlockSpec((1, tq, D), lambda b, qi, ki: (b, qi, 0)),
            scratch_shapes=[
                pltpu.VMEM((num_heads, tq, 1), jnp.float32),   # running max
                pltpu.VMEM((num_heads, tq, 1), jnp.float32),   # running sum
                pltpu.VMEM((num_heads, tq, d_k), jnp.float32), # accumulator
            ],
        ),
        out_shape=jax.ShapeDtypeStruct((B, S, D), out_dtype),
        compiler_params=pltpu.CompilerParams(
            dimension_semantics=("parallel", "parallel", "arbitrary"),
            vmem_limit_bytes=_vmem_limit(est)),
        cost_estimate=cost,
    )(qp, kp, vp)


# ----------------------------------------------------------------------------
# Full forward pass
# ----------------------------------------------------------------------------
@functools.partial(jax.jit, static_argnames=("num_heads", "masked"))
def multi_head_attention(q, k, v, w_q, w_k, w_v, w_o, *, num_heads, masked=False):
    """Equivalent to MultiHeadAttention.forward (eval mode, bias=False).

    q, k, v: (B, S, D).  w_*: (D, D) in nn.Linear convention
    (out_features, in_features); projections compute x @ W.T (contraction on
    the weights' last dim — no host-side transpose).
    """
    B, S, D = q.shape
    assert D % num_heads == 0, "dim_model is not divisible by num_heads"
    d_k = D // num_heads
    scale = d_k ** (-0.5)

    # Fused, row-tiled Q/K/V projection.  Emits bf16 so the attention matmuls
    # run the MXU at its bf16 rate and K/V DMA bytes are halved; the attention
    # score scale is folded into the Q output.  (f32 accumulation everywhere.)
    qp, kp, vp = _fused_qkv_projection(
        q.reshape(B * S, D), k.reshape(B * S, D), v.reshape(B * S, D),
        w_q, w_k, w_v, scale=scale, out_dtype=jnp.bfloat16)
    qp = qp.reshape(B, S, D)
    kp = kp.reshape(B, S, D)
    vp = vp.reshape(B, S, D)

    # Flash-style attention directly in (B, S, D) layout — no head
    # split/combine transposes; output is already in the "combined" layout.
    attn = _flash_attention(qp, kp, vp, num_heads=num_heads, masked=masked,
                            out_dtype=q.dtype)

    out = _linear(attn.reshape(B * S, D), w_o)
    return out.reshape(B, S, D)


# ----------------------------------------------------------------------------
# Pure-JAX reference (correctness check)
# ----------------------------------------------------------------------------
def _reference(q, k, v, w_q, w_k, w_v, w_o, *, num_heads, masked=False):
    B, S, D = q.shape
    d_k = D // num_heads

    def split(t):
        return t.reshape(B, S, num_heads, d_k).transpose(0, 2, 1, 3)

    qh, kh, vh = split(q @ w_q.T), split(k @ w_k.T), split(v @ w_v.T)
    scores = jnp.einsum("bhqd,bhkd->bhqk", qh, kh) * d_k ** (-0.5)
    if masked:
        row = jax.lax.broadcasted_iota(jnp.int32, (S, S), 0)
        col = jax.lax.broadcasted_iota(jnp.int32, (S, S), 1)
        scores = jnp.where(col <= row, scores, -jnp.inf)
    attn = jax.nn.softmax(scores, axis=-1)
    out = jnp.einsum("bhqk,bhkd->bhqd", attn, vh)
    out = out.transpose(0, 2, 1, 3).reshape(B, S, D)
    return out @ w_o.T


# ----------------------------------------------------------------------------
if __name__ == "__main__":
    # Small shapes consistent with the module: batch=2, seq=8, dim_model=32, heads=4.
    B, S, D, H = 2, 8, 32, 4
    key = jax.random.PRNGKey(0)
    kq, kk, kv, kwq, kwk, kwv, kwo = jax.random.split(key, 7)

    q = jax.random.normal(kq, (B, S, D), dtype=jnp.float32)
    k = jax.random.normal(kk, (B, S, D), dtype=jnp.float32)
    v = jax.random.normal(kv, (B, S, D), dtype=jnp.float32)

    bound = 1.0 / math.sqrt(D)
    w_q = jax.random.uniform(kwq, (D, D), jnp.float32, -bound, bound)
    w_k = jax.random.uniform(kwk, (D, D), jnp.float32, -bound, bound)
    w_v = jax.random.uniform(kwv, (D, D), jnp.float32, -bound, bound)
    w_o = jax.random.uniform(kwo, (D, D), jnp.float32, -bound, bound)

    ok = True
    for masked in (False, True):
        out = multi_head_attention(
            q, k, v, w_q, w_k, w_v, w_o, num_heads=H, masked=masked)
        out = jax.block_until_ready(out)
        ref = _reference(q, k, v, w_q, w_k, w_v, w_o, num_heads=H, masked=masked)
        ok = ok and out.shape == (B, S, D)
        # Tolerance reflects bf16 MXU operands in the attention path
        # (f32 accumulation, f32 reference).
        ok = ok and bool(jnp.allclose(out, ref, atol=2e-2, rtol=2e-2))

    assert ok
    print("KERNEL_OK")
</pallas_src>

<mosaic_0001>
module attributes {stable_mosaic.version = 11 : i64} {
  func.func @_linear_kernel(%arg0: i32, %arg1: memref<16x32xf32, #tpu.memory_space<vmem>>, %arg2: memref<32x32xf32, #tpu.memory_space<vmem>>, %arg3: memref<16x32xf32, #tpu.memory_space<vmem>>) attributes {dimension_semantics = [#tpu.dimension_semantics<parallel>], iteration_bounds = array<i64: 1>, scalar_prefetch = 0 : i64, scratch_operands = 0 : i64, tpu.core_type = #tpu.core_type<tc>, window_params = [{transform_indices = @transform_0, window_bounds = array<i64: 16, 32>}, {pipeline_mode = #tpu.pipeline_mode<synchronous>, transform_indices = @transform_1, window_bounds = array<i64: 32, 32>}, {transform_indices = @transform_2, window_bounds = array<i64: 16, 32>}]} {
    %c0 = arith.constant 0 : index
    %c0_0 = arith.constant 0 : index
    %0 = vector.load %arg1[%c0, %c0_0] : memref<16x32xf32, #tpu.memory_space<vmem>>, vector<16x32xf32>
    %c0_1 = arith.constant 0 : index
    %c0_2 = arith.constant 0 : index
    %1 = vector.load %arg2[%c0_1, %c0_2] : memref<32x32xf32, #tpu.memory_space<vmem>>, vector<32x32xf32>
    %cst = arith.constant dense<0.000000e+00> : vector<16x32xf32>
    %2 = tpu.matmul %0, %1, %cst {dimension_numbers = #tpu.dot_dimension_numbers<[1], [1], [0], [0], [0, 0, 1, 0], [], []>} : vector<16x32xf32>, vector<32x32xf32>, vector<16x32xf32> -> vector<16x32xf32>
    %c0_3 = arith.constant 0 : index
    %c0_4 = arith.constant 0 : index
    %3 = vector.load %arg3[%c0_3, %c0_4] : memref<16x32xf32, #tpu.memory_space<vmem>>, vector<16x32xf32>
    tpu.vector_store %arg3[%c0_3, %c0_4], %2 {strides = array<i32>} : memref<16x32xf32, #tpu.memory_space<vmem>>, vector<16x32xf32>,
    return
  }
  func.func @transform_0(%arg0: i32) -> (i32, i32) {
    %c0_i32 = arith.constant 0 : i32
    %c0_i32_0 = arith.constant 0 : i32
    return %arg0, %c0_i32 : i32, i32
  }
  func.func @transform_1(%arg0: i32) -> (i32, i32) {
    %c0_i32 = arith.constant 0 : i32
    %c0_i32_0 = arith.constant 0 : i32
    %c0_i32_1 = arith.constant 0 : i32
    return %c0_i32, %c0_i32_0 : i32, i32
  }
  func.func @transform_2(%arg0: i32) -> (i32, i32) {
    %c0_i32 = arith.constant 0 : i32
    %c0_i32_0 = arith.constant 0 : i32
    return %arg0, %c0_i32 : i32, i32
  }
}

module attributes {stable_mosaic.version = 11 : i64} {
  func.func @_qkv_proj_kernel(%arg0: i32, %arg1: memref<16x32xf32, #tpu.memory_space<vmem>>, %arg2: memref<16x32xf32, #tpu.memory_space<vmem>>, %arg3: memref<16x32xf32, #tpu.memory_space<vmem>>, %arg4: memref<32x32xf32, #tpu.memory_space<vmem>>, %arg5: memref<32x32xf32, #tpu.memory_space<vmem>>, %arg6: memref<32x32xf32, #tpu.memory_space<vmem>>, %arg7: memref<16x32xbf16, #tpu.memory_space<vmem>>, %arg8: memref<16x32xbf16, #tpu.memory_space<vmem>>, %arg9: memref<16x32xbf16, #tpu.memory_space<vmem>>) attributes {dimension_semantics = [#tpu.dimension_semantics<parallel>], iteration_bounds = array<i64: 1>, scalar_prefetch = 0 : i64, scratch_operands = 0 : i64, tpu.core_type = #tpu.core_type<tc>, window_params = [{transform_indices = @transform_0, window_bounds = array<i64: 16, 32>}, {transform_indices = @transform_1, window_bounds = array<i64: 16, 32>}, {transform_indices = @transform_2, window_bounds = array<i64: 16, 32>}, {pipeline_mode = #tpu.pipeline_mode<synchronous>, transform_indices = @transform_3, window_bounds = array<i64: 32, 32>}, {pipeline_mode = #tpu.pipeline_mode<synchronous>, transform_indices = @transform_4, window_bounds = array<i64: 32, 32>}, {pipeline_mode = #tpu.pipeline_mode<synchronous>, transform_indices = @transform_5, window_bounds = array<i64: 32, 32>}, {transform_indices = @transform_6, window_bounds = array<i64: 16, 32>}, {transform_indices = @transform_7, window_bounds = array<i64: 16, 32>}, {transform_indices = @transform_8, window_bounds = array<i64: 16, 32>}]} {
    %c0 = arith.constant 0 : index
    %c0_0 = arith.constant 0 : index
    %0 = vector.load %arg1[%c0, %c0_0] : memref<16x32xf32, #tpu.memory_space<vmem>>, vector<16x32xf32>
    %c0_1 = arith.constant 0 : index
    %c0_2 = arith.constant 0 : index
    %1 = vector.load %arg4[%c0_1, %c0_2] : memref<32x32xf32, #tpu.memory_space<vmem>>, vector<32x32xf32>
    %cst = arith.constant dense<0.000000e+00> : vector<16x32xf32>
    %2 = tpu.matmul %0, %1, %cst {dimension_numbers = #tpu.dot_dimension_numbers<[1], [1], [0], [0], [0, 0, 1, 0], [], []>} : vector<16x32xf32>, vector<32x32xf32>, vector<16x32xf32> -> vector<16x32xf32>
    %cst_3 = arith.constant 0.353553385 : f32
    %3 = vector.broadcast %cst_3 : f32 to vector<16x32xf32>
    %4 = arith.mulf %2, %3 : vector<16x32xf32>
    %5 = arith.truncf %4 : vector<16x32xf32> to vector<16x32xbf16>
    %c0_4 = arith.constant 0 : index
    %c0_5 = arith.constant 0 : index
    %6 = vector.load %arg7[%c0_4, %c0_5] : memref<16x32xbf16, #tpu.memory_space<vmem>>, vector<16x32xbf16>
    tpu.vector_store %arg7[%c0_4, %c0_5], %5 {strides = array<i32>} : memref<16x32xbf16, #tpu.memory_space<vmem>>, vector<16x32xbf16>,
    %c0_6 = arith.constant 0 : index
    %c0_7 = arith.constant 0 : index
    %7 = vector.load %arg2[%c0_6, %c0_7] : memref<16x32xf32, #tpu.memory_space<vmem>>, vector<16x32xf32>
    %c0_8 = arith.constant 0 : index
    %c0_9 = arith.constant 0 : index
    %8 = vector.load %arg5[%c0_8, %c0_9] : memref<32x32xf32, #tpu.memory_space<vmem>>, vector<32x32xf32>
    %cst_10 = arith.constant dense<0.000000e+00> : vector<16x32xf32>
    %9 = tpu.matmul %7, %8, %cst_10 {dimension_numbers = #tpu.dot_dimension_numbers<[1], [1], [0], [0], [0, 0, 1, 0], [], []>} : vector<16x32xf32>, vector<32x32xf32>, vector<16x32xf32> -> vector<16x32xf32>
    %10 = arith.truncf %9 : vector<16x32xf32> to vector<16x32xbf16>
    %c0_11 = arith.constant 0 : index
    %c0_12 = arith.constant 0 : index
    %11 = vector.load %arg8[%c0_11, %c0_12] : memref<16x32xbf16, #tpu.memory_space<vmem>>, vector<16x32xbf16>
    tpu.vector_store %arg8[%c0_11, %c0_12], %10 {strides = array<i32>} : memref<16x32xbf16, #tpu.memory_space<vmem>>, vector<16x32xbf16>,
    %c0_13 = arith.constant 0 : index
    %c0_14 = arith.constant 0 : index
    %12 = vector.load %arg3[%c0_13, %c0_14] : memref<16x32xf32, #tpu.memory_space<vmem>>, vector<16x32xf32>
    %c0_15 = arith.constant 0 : index
    %c0_16 = arith.constant 0 : index
    %13 = vector.load %arg6[%c0_15, %c0_16] : memref<32x32xf32, #tpu.memory_space<vmem>>, vector<32x32xf32>
    %cst_17 = arith.constant dense<0.000000e+00> : vector<16x32xf32>
    %14 = tpu.matmul %12, %13, %cst_17 {dimension_numbers = #tpu.dot_dimension_numbers<[1], [1], [0], [0], [0, 0, 1, 0], [], []>} : vector<16x32xf32>, vector<32x32xf32>, vector<16x32xf32> -> vector<16x32xf32>
    %15 = arith.truncf %14 : vector<16x32xf32> to vector<16x32xbf16>
    %c0_18 = arith.constant 0 : index
    %c0_19 = arith.constant 0 : index
    %16 = vector.load %arg9[%c0_18, %c0_19] : memref<16x32xbf16, #tpu.memory_space<vmem>>, vector<16x32xbf16>
    tpu.vector_store %arg9[%c0_18, %c0_19], %15 {strides = array<i32>} : memref<16x32xbf16, #tpu.memory_space<vmem>>, vector<16x32xbf16>,
    return
  }
  func.func @transform_0(%arg0: i32) -> (i32, i32) {
    %c0_i32 = arith.constant 0 : i32
    %c0_i32_0 = arith.constant 0 : i32
    return %arg0, %c0_i32 : i32, i32
  }
  func.func @transform_1(%arg0: i32) -> (i32, i32) {
    %c0_i32 = arith.constant 0 : i32
    %c0_i32_0 = arith.constant 0 : i32
    return %arg0, %c0_i32 : i32, i32
  }
  func.func @transform_2(%arg0: i32) -> (i32, i32) {
    %c0_i32 = arith.constant 0 : i32
    %c0_i32_0 = arith.constant 0 : i32
    return %arg0, %c0_i32 : i32, i32
  }
  func.func @transform_3(%arg0: i32) -> (i32, i32) {
    %c0_i32 = arith.constant 0 : i32
    %c0_i32_0 = arith.constant 0 : i32
    %c0_i32_1 = arith.constant 0 : i32
    return %c0_i32, %c0_i32_0 : i32, i32
  }
  func.func @transform_4(%arg0: i32) -> (i32, i32) {
    %c0_i32 = arith.constant 0 : i32
    %c0_i32_0 = arith.constant 0 : i32
    %c0_i32_1 = arith.constant 0 : i32
    return %c0_i32, %c0_i32_0 : i32, i32
  }
  func.func @transform_5(%arg0: i32) -> (i32, i32) {
    %c0_i32 = arith.constant 0 : i32
    %c0_i32_0 = arith.constant 0 : i32
    %c0_i32_1 = arith.constant 0 : i32
    return %c0_i32, %c0_i32_0 : i32, i32
  }
  func.func @transform_6(%arg0: i32) -> (i32, i32) {
    %c0_i32 = arith.constant 0 : i32
    %c0_i32_0 = arith.constant 0 : i32
    return %arg0, %c0_i32 : i32, i32
  }
  func.func @transform_7(%arg0: i32) -> (i32, i32) {
    %c0_i32 = arith.constant 0 : i32
    %c0_i32_0 = arith.constant 0 : i32
    return %arg0, %c0_i32 : i32, i32
  }
  func.func @transform_8(%arg0: i32) -> (i32, i32) {
    %c0_i32 = arith.constant 0 : i32
    %c0_i32_0 = arith.constant 0 : i32
    return %arg0, %c0_i32 : i32, i32
  }
}

module attributes {stable_mosaic.version = 11 : i64} {
  func.func @_flash_mha_kernel(%arg0: i32, %arg1: i32, %arg2: i32, %arg3: memref<1x8x32xbf16, #tpu.memory_space<vmem>>, %arg4: memref<1x8x32xbf16, #tpu.memory_space<vmem>>, %arg5: memref<1x8x32xbf16, #tpu.memory_space<vmem>>, %arg6: memref<1x8x32xf32, #tpu.memory_space<vmem>>, %arg7: memref<4x8x1xf32, #tpu.memory_space<vmem>>, %arg8: memref<4x8x1xf32, #tpu.memory_space<vmem>>, %arg9: memref<4x8x8xf32, #tpu.memory_space<vmem>>) attributes {dimension_semantics = [#tpu.dimension_semantics<parallel>, #tpu.dimension_semantics<parallel>, #tpu.dimension_semantics<arbitrary>], iteration_bounds = array<i64: 2, 1, 1>, scalar_prefetch = 0 : i64, scratch_operands = 3 : i64, tpu.core_type = #tpu.core_type<tc>, window_params = [{transform_indices = @transform_0, window_bounds = array<i64: 1, 8, 32>}, {transform_indices = @transform_1, window_bounds = array<i64: 1, 8, 32>}, {transform_indices = @transform_2, window_bounds = array<i64: 1, 8, 32>}, {transform_indices = @transform_3, window_bounds = array<i64: 1, 8, 32>}]} {
    %c0_i32 = arith.constant 0 : i32
    %0 = arith.cmpi eq, %arg2, %c0_i32 : i32
    %1 = arith.extui %0 : i1 to i32
    %c0_i32_0 = arith.constant 0 : i32
    %2 = arith.cmpi ne, %1, %c0_i32_0 : i32
    scf.if %2 {
      %cst_119 = arith.constant 0xFF800000 : f32
      %162 = vector.broadcast %cst_119 : f32 to vector<4x8x1xf32>
      %c0_120 = arith.constant 0 : index
      %c0_121 = arith.constant 0 : index
      %c0_122 = arith.constant 0 : index
      %163 = vector.load %arg7[%c0_120, %c0_121, %c0_122] : memref<4x8x1xf32, #tpu.memory_space<vmem>>, vector<4x8x1xf32>
      tpu.vector_store %arg7[%c0_120, %c0_121, %c0_122], %162 {strides = array<i32>} : memref<4x8x1xf32, #tpu.memory_space<vmem>>, vector<4x8x1xf32>,
      %cst_123 = arith.constant 0.000000e+00 : f32
      %164 = vector.broadcast %cst_123 : f32 to vector<4x8x1xf32>
      %c0_124 = arith.constant 0 : index
      %c0_125 = arith.constant 0 : index
      %c0_126 = arith.constant 0 : index
      %165 = vector.load %arg8[%c0_124, %c0_125, %c0_126] : memref<4x8x1xf32, #tpu.memory_space<vmem>>, vector<4x8x1xf32>
      tpu.vector_store %arg8[%c0_124, %c0_125, %c0_126], %164 {strides = array<i32>} : memref<4x8x1xf32, #tpu.memory_space<vmem>>, vector<4x8x1xf32>,
      %cst_127 = arith.constant 0.000000e+00 : f32
      %166 = vector.broadcast %cst_127 : f32 to vector<4x8x8xf32>
      %c0_128 = arith.constant 0 : index
      %c0_129 = arith.constant 0 : index
      %c0_130 = arith.constant 0 : index
      %167 = vector.load %arg9[%c0_128, %c0_129, %c0_130] : memref<4x8x8xf32, #tpu.memory_space<vmem>>, vector<4x8x8xf32>
      tpu.vector_store %arg9[%c0_128, %c0_129, %c0_130], %166 {strides = array<i32>} : memref<4x8x8xf32, #tpu.memory_space<vmem>>, vector<4x8x8xf32>,
    } else {
    }
    %c0 = arith.constant 0 : index
    %c0_1 = arith.constant 0 : index
    %c0_2 = arith.constant 0 : index
    %3 = vector.load %arg3[%c0, %c0_1, %c0_2] : memref<1x8x32xbf16, #tpu.memory_space<vmem>>, vector<1x8x8xbf16>
    %4 = vector.shape_cast %3 : vector<1x8x8xbf16> to vector<8x8xbf16>
    %c0_3 = arith.constant 0 : index
    %c0_4 = arith.constant 0 : index
    %c0_5 = arith.constant 0 : index
    %5 = vector.load %arg4[%c0_3, %c0_4, %c0_5] : memref<1x8x32xbf16, #tpu.memory_space<vmem>>, vector<1x8x8xbf16>
    %6 = vector.shape_cast %5 : vector<1x8x8xbf16> to vector<8x8xbf16>
    %c0_6 = arith.constant 0 : index
    %c0_7 = arith.constant 0 : index
    %c0_8 = arith.constant 0 : index
    %7 = vector.load %arg5[%c0_6, %c0_7, %c0_8] : memref<1x8x32xbf16, #tpu.memory_space<vmem>>, vector<1x8x8xbf16>
    %8 = vector.shape_cast %7 : vector<1x8x8xbf16> to vector<8x8xbf16>
    %cst = arith.constant dense<0.000000e+00> : vector<8x8xf32>
    %9 = tpu.matmul %4, %6, %cst {dimension_numbers = #tpu.dot_dimension_numbers<[1], [1], [0], [0], [0, 0, 1, 0], [], []>} : vector<8x8xbf16>, vector<8x8xbf16>, vector<8x8xf32> -> vector<8x8xf32>
    %c0_9 = arith.constant 0 : index
    %c0_10 = arith.constant 0 : index
    %c0_11 = arith.constant 0 : index
    %10 = vector.load %arg7[%c0_9, %c0_10, %c0_11] : memref<4x8x1xf32, #tpu.memory_space<vmem>>, vector<1x8x1xf32>
    %11 = vector.shape_cast %10 : vector<1x8x1xf32> to vector<8x1xf32>
    %cst_12 = arith.constant dense<0xFF800000> : vector<8xf32>
    %12 = vector.multi_reduction <maximumf>, %9, %cst_12 [1] : vector<8x8xf32> to vector<8xf32>
    %13 = vector.shape_cast %12 : vector<8xf32> to vector<8x1xf32>
    %14 = arith.maximumf %11, %13 : vector<8x1xf32>
    %15 = arith.subf %11, %14 : vector<8x1xf32>
    %16 = math.exp %15 : vector<8x1xf32>
    %17 = vector.broadcast %14 : vector<8x1xf32> to vector<8x8xf32>
    %18 = arith.subf %9, %17 : vector<8x8xf32>
    %19 = math.exp %18 : vector<8x8xf32>
    %c0_13 = arith.constant 0 : index
    %c0_14 = arith.constant 0 : index
    %c0_15 = arith.constant 0 : index
    %20 = vector.load %arg8[%c0_13, %c0_14, %c0_15] : memref<4x8x1xf32, #tpu.memory_space<vmem>>, vector<1x8x1xf32>
    %21 = vector.shape_cast %20 : vector<1x8x1xf32> to vector<8x1xf32>
    %22 = arith.mulf %16, %21 : vector<8x1xf32>
    %cst_16 = arith.constant dense<0.000000e+00> : vector<8xf32>
    %23 = vector.multi_reduction <add>, %19, %cst_16 [1] : vector<8x8xf32> to vector<8xf32>
    %24 = vector.shape_cast %23 : vector<8xf32> to vector<8x1xf32>
    %25 = arith.addf %22, %24 : vector<8x1xf32>
    %c0_17 = arith.constant 0 : index
    %c0_18 = arith.constant 0 : index
    %c0_19 = arith.constant 0 : index
    %26 = vector.load %arg8[%c0_17, %c0_18, %c0_19] : memref<4x8x1xf32, #tpu.memory_space<vmem>>, vector<1x8x1xf32>
    %27 = vector.shape_cast %26 : vector<1x8x1xf32> to vector<8x1xf32>
    %28 = vector.shape_cast %25 : vector<8x1xf32> to vector<1x8x1xf32>
    tpu.vector_store %arg8[%c0_17, %c0_18, %c0_19], %28 {strides = array<i32>} : memref<4x8x1xf32, #tpu.memory_space<vmem>>, vector<1x8x1xf32>,
    %c0_20 = arith.constant 0 : index
    %c0_21 = arith.constant 0 : index
    %c0_22 = arith.constant 0 : index
    %29 = vector.load %arg9[%c0_20, %c0_21, %c0_22] : memref<4x8x8xf32, #tpu.memory_space<vmem>>, vector<1x8x8xf32>
    %30 = vector.shape_cast %29 : vector<1x8x8xf32> to vector<8x8xf32>
    %31 = vector.broadcast %16 : vector<8x1xf32> to vector<8x8xf32>
    %32 = arith.mulf %31, %30 : vector<8x8xf32>
    %33 = arith.truncf %19 : vector<8x8xf32> to vector<8x8xbf16>
    %cst_23 = arith.constant dense<0.000000e+00> : vector<8x8xf32>
    %34 = tpu.matmul %33, %8, %cst_23 {dimension_numbers = #tpu.dot_dimension_numbers<[1], [0], [0], [1], [0, 0, 1, 1], [], []>} : vector<8x8xbf16>, vector<8x8xbf16>, vector<8x8xf32> -> vector<8x8xf32>
    %35 = arith.addf %32, %34 : vector<8x8xf32>
    %c0_24 = arith.constant 0 : index
    %c0_25 = arith.constant 0 : index
    %c0_26 = arith.constant 0 : index
    %36 = vector.load %arg9[%c0_24, %c0_25, %c0_26] : memref<4x8x8xf32, #tpu.memory_space<vmem>>, vector<1x8x8xf32>
    %37 = vector.shape_cast %36 : vector<1x8x8xf32> to vector<8x8xf32>
    %38 = vector.shape_cast %35 : vector<8x8xf32> to vector<1x8x8xf32>
    tpu.vector_store %arg9[%c0_24, %c0_25, %c0_26], %38 {strides = array<i32>} : memref<4x8x8xf32, #tpu.memory_space<vmem>>, vector<1x8x8xf32>,
    %c0_27 = arith.constant 0 : index
    %c0_28 = arith.constant 0 : index
    %c0_29 = arith.constant 0 : index
    %39 = vector.load %arg7[%c0_27, %c0_28, %c0_29] : memref<4x8x1xf32, #tpu.memory_space<vmem>>, vector<1x8x1xf32>
    %40 = vector.shape_cast %39 : vector<1x8x1xf32> to vector<8x1xf32>
    %41 = vector.shape_cast %14 : vector<8x1xf32> to vector<1x8x1xf32>
    tpu.vector_store %arg7[%c0_27, %c0_28, %c0_29], %41 {strides = array<i32>} : memref<4x8x1xf32, #tpu.memory_space<vmem>>, vector<1x8x1xf32>,
    %c0_30 = arith.constant 0 : index
    %c0_31 = arith.constant 0 : index
    %c8 = arith.constant 8 : index
    %42 = vector.load %arg3[%c0_30, %c0_31, %c8] : memref<1x8x32xbf16, #tpu.memory_space<vmem>>, vector<1x8x8xbf16>
    %43 = vector.shape_cast %42 : vector<1x8x8xbf16> to vector<8x8xbf16>
    %c0_32 = arith.constant 0 : index
    %c0_33 = arith.constant 0 : index
    %c8_34 = arith.constant 8 : index
    %44 = vector.load %arg4[%c0_32, %c0_33, %c8_34] : memref<1x8x32xbf16, #tpu.memory_space<vmem>>, vector<1x8x8xbf16>
    %45 = vector.shape_cast %44 : vector<1x8x8xbf16> to vector<8x8xbf16>
    %c0_35 = arith.constant 0 : index
    %c0_36 = arith.constant 0 : index
    %c8_37 = arith.constant 8 : index
    %46 = vector.load %arg5[%c0_35, %c0_36, %c8_37] : memref<1x8x32xbf16, #tpu.memory_space<vmem>>, vector<1x8x8xbf16>
    %47 = vector.shape_cast %46 : vector<1x8x8xbf16> to vector<8x8xbf16>
    %cst_38 = arith.constant dense<0.000000e+00> : vector<8x8xf32>
    %48 = tpu.matmul %43, %45, %cst_38 {dimension_numbers = #tpu.dot_dimension_numbers<[1], [1], [0], [0], [0, 0, 1, 0], [], []>} : vector<8x8xbf16>, vector<8x8xbf16>, vector<8x8xf32> -> vector<8x8xf32>
    %c1 = arith.constant 1 : index
    %c0_39 = arith.constant 0 : index
    %c0_40 = arith.constant 0 : index
    %49 = vector.load %arg7[%c1, %c0_39, %c0_40] : memref<4x8x1xf32, #tpu.memory_space<vmem>>, vector<1x8x1xf32>
    %50 = vector.shape_cast %49 : vector<1x8x1xf32> to vector<8x1xf32>
    %cst_41 = arith.constant dense<0xFF800000> : vector<8xf32>
    %51 = vector.multi_reduction <maximumf>, %48, %cst_41 [1] : vector<8x8xf32> to vector<8xf32>
    %52 = vector.shape_cast %51 : vector<8xf32> to vector<8x1xf32>
    %53 = arith.maximumf %50, %52 : vector<8x1xf32>
    %54 = arith.subf %50, %53 : vector<8x1xf32>
    %55 = math.exp %54 : vector<8x1xf32>
    %56 = vector.broadcast %53 : vector<8x1xf32> to vector<8x8xf32>
    %57 = arith.subf %48, %56 : vector<8x8xf32>
    %58 = math.exp %57 : vector<8x8xf32>
    %c1_42 = arith.constant 1 : index
    %c0_43 = arith.constant 0 : index
    %c0_44 = arith.constant 0 : index
    %59 = vector.load %arg8[%c1_42, %c0_43, %c0_44] : memref<4x8x1xf32, #tpu.memory_space<vmem>>, vector<1x8x1xf32>
    %60 = vector.shape_cast %59 : vector<1x8x1xf32> to vector<8x1xf32>
    %61 = arith.mulf %55, %60 : vector<8x1xf32>
    %cst_45 = arith.constant dense<0.000000e+00> : vector<8xf32>
    %62 = vector.multi_reduction <add>, %58, %cst_45 [1] : vector<8x8xf32> to vector<8xf32>
    %63 = vector.shape_cast %62 : vector<8xf32> to vector<8x1xf32>
    %64 = arith.addf %61, %63 : vector<8x1xf32>
    %c1_46 = arith.constant 1 : index
    %c0_47 = arith.constant 0 : index
    %c0_48 = arith.constant 0 : index
    %65 = vector.load %arg8[%c1_46, %c0_47, %c0_48] : memref<4x8x1xf32, #tpu.memory_space<vmem>>, vector<1x8x1xf32>
    %66 = vector.shape_cast %65 : vector<1x8x1xf32> to vector<8x1xf32>
    %67 = vector.shape_cast %64 : vector<8x1xf32> to vector<1x8x1xf32>
    tpu.vector_store %arg8[%c1_46, %c0_47, %c0_48], %67 {strides = array<i32>} : memref<4x8x1xf32, #tpu.memory_space<vmem>>, vector<1x8x1xf32>,
    %c1_49 = arith.constant 1 : index
    %c0_50 = arith.constant 0 : index
    %c0_51 = arith.constant 0 : index
    %68 = vector.load %arg9[%c1_49, %c0_50, %c0_51] : memref<4x8x8xf32, #tpu.memory_space<vmem>>, vector<1x8x8xf32>
    %69 = vector.shape_cast %68 : vector<1x8x8xf32> to vector<8x8xf32>
    %70 = vector.broadcast %55 : vector<8x1xf32> to vector<8x8xf32>
    %71 = arith.mulf %70, %69 : vector<8x8xf32>
    %72 = arith.truncf %58 : vector<8x8xf32> to vector<8x8xbf16>
    %cst_52 = arith.constant dense<0.000000e+00> : vector<8x8xf32>
    %73 = tpu.matmul %72, %47, %cst_52 {dimension_numbers = #tpu.dot_dimension_numbers<[1], [0], [0], [1], [0, 0, 1, 1], [], []>} : vector<8x8xbf16>, vector<8x8xbf16>, vector<8x8xf32> -> vector<8x8xf32>
    %74 = arith.addf %71, %73 : vector<8x8xf32>
    %c1_53 = arith.constant 1 : index
    %c0_54 = arith.constant 0 : index
    %c0_55 = arith.constant 0 : index
    %75 = vector.load %arg9[%c1_53, %c0_54, %c0_55] : memref<4x8x8xf32, #tpu.memory_space<vmem>>, vector<1x8x8xf32>
    %76 = vector.shape_cast %75 : vector<1x8x8xf32> to vector<8x8xf32>
    %77 = vector.shape_cast %74 : vector<8x8xf32> to vector<1x8x8xf32>
    tpu.vector_store %arg9[%c1_53, %c0_54, %c0_55], %77 {strides = array<i32>} : memref<4x8x8xf32, #tpu.memory_space<vmem>>, vector<1x8x8xf32>,
    %c1_56 = arith.constant 1 : index
    %c0_57 = arith.constant 0 : index
    %c0_58 = arith.constant 0 : index
    %78 = vector.load %arg7[%c1_56, %c0_57, %c0_58] : memref<4x8x1xf32, #tpu.memory_space<vmem>>, vector<1x8x1xf32>
    %79 = vector.shape_cast %78 : vector<1x8x1xf32> to vector<8x1xf32>
    %80 = vector.shape_cast %53 : vector<8x1xf32> to vector<1x8x1xf32>
    tpu.vector_store %arg7[%c1_56, %c0_57, %c0_58], %80 {strides = array<i32>} : memref<4x8x1xf32, #tpu.memory_space<vmem>>, vector<1x8x1xf32>,
    %c0_59 = arith.constant 0 : index
    %c0_60 = arith.constant 0 : index
    %c16 = arith.constant 16 : index
    %81 = vector.load %arg3[%c0_59, %c0_60, %c16] : memref<1x8x32xbf16, #tpu.memory_space<vmem>>, vector<1x8x8xbf16>
    %82 = vector.shape_cast %81 : vector<1x8x8xbf16> to vector<8x8xbf16>
    %c0_61 = arith.constant 0 : index
    %c0_62 = arith.constant 0 : index
    %c16_63 = arith.constant 16 : index
    %83 = vector.load %arg4[%c0_61, %c0_62, %c16_63] : memref<1x8x32xbf16, #tpu.memory_space<vmem>>, vector<1x8x8xbf16>
    %84 = vector.shape_cast %83 : vector<1x8x8xbf16> to vector<8x8xbf16>
    %c0_64 = arith.constant 0 : index
    %c0_65 = arith.constant 0 : index
    %c16_66 = arith.constant 16 : index
    %85 = vector.load %arg5[%c0_64, %c0_65, %c16_66] : memref<1x8x32xbf16, #tpu.memory_space<vmem>>, vector<1x8x8xbf16>
    %86 = vector.shape_cast %85 : vector<1x8x8xbf16> to vector<8x8xbf16>
    %cst_67 = arith.constant dense<0.000000e+00> : vector<8x8xf32>
    %87 = tpu.matmul %82, %84, %cst_67 {dimension_numbers = #tpu.dot_dimension_numbers<[1], [1], [0], [0], [0, 0, 1, 0], [], []>} : vector<8x8xbf16>, vector<8x8xbf16>, vector<8x8xf32> -> vector<8x8xf32>
    %c2 = arith.constant 2 : index
    %c0_68 = arith.constant 0 : index
    %c0_69 = arith.constant 0 : index
    %88 = vector.load %arg7[%c2, %c0_68, %c0_69] : memref<4x8x1xf32, #tpu.memory_space<vmem>>, vector<1x8x1xf32>
    %89 = vector.shape_cast %88 : vector<1x8x1xf32> to vector<8x1xf32>
    %cst_70 = arith.constant dense<0xFF800000> : vector<8xf32>
    %90 = vector.multi_reduction <maximumf>, %87, %cst_70 [1] : vector<8x8xf32> to vector<8xf32>
    %91 = vector.shape_cast %90 : vector<8xf32> to vector<8x1xf32>
    %92 = arith.maximumf %89, %91 : vector<8x1xf32>
    %93 = arith.subf %89, %92 : vector<8x1xf32>
    %94 = math.exp %93 : vector<8x1xf32>
    %95 = vector.broadcast %92 : vector<8x1xf32> to vector<8x8xf32>
    %96 = arith.subf %87, %95 : vector<8x8xf32>
    %97 = math.exp %96 : vector<8x8xf32>
    %c2_71 = arith.constant 2 : index
    %c0_72 = arith.constant 0 : index
    %c0_73 = arith.constant 0 : index
    %98 = vector.load %arg8[%c2_71, %c0_72, %c0_73] : memref<4x8x1xf32, #tpu.memory_space<vmem>>, vector<1x8x1xf32>
    %99 = vector.shape_cast %98 : vector<1x8x1xf32> to vector<8x1xf32>
    %100 = arith.mulf %94, %99 : vector<8x1xf32>
    %cst_74 = arith.constant dense<0.000000e+00> : vector<8xf32>
    %101 = vector.multi_reduction <add>, %97, %cst_74 [1] : vector<8x8xf32> to vector<8xf32>
    %102 = vector.shape_cast %101 : vector<8xf32> to vector<8x1xf32>
    %103 = arith.addf %100, %102 : vector<8x1xf32>
    %c2_75 = arith.constant 2 : index
    %c0_76 = arith.constant 0 : index
    %c0_77 = arith.constant 0 : index
    %104 = vector.load %arg8[%c2_75, %c0_76, %c0_77] : memref<4x8x1xf32, #tpu.memory_space<vmem>>, vector<1x8x1xf32>
    %105 = vector.shape_cast %104 : vector<1x8x1xf32> to vector<8x1xf32>
    %106 = vector.shape_cast %103 : vector<8x1xf32> to vector<1x8x1xf32>
    tpu.vector_store %arg8[%c2_75, %c0_76, %c0_77], %106 {strides = array<i32>} : memref<4x8x1xf32, #tpu.memory_space<vmem>>, vector<1x8x1xf32>,
    %c2_78 = arith.constant 2 : index
    %c0_79 = arith.constant 0 : index
    %c0_80 = arith.constant 0 : index
    %107 = vector.load %arg9[%c2_78, %c0_79, %c0_80] : memref<4x8x8xf32, #tpu.memory_space<vmem>>, vector<1x8x8xf32>
    %108 = vector.shape_cast %107 : vector<1x8x8xf32> to vector<8x8xf32>
    %109 = vector.broadcast %94 : vector<8x1xf32> to vector<8x8xf32>
    %110 = arith.mulf %109, %108 : vector<8x8xf32>
    %111 = arith.truncf %97 : vector<8x8xf32> to vector<8x8xbf16>
    %cst_81 = arith.constant dense<0.000000e+00> : vector<8x8xf32>
    %112 = tpu.matmul %111, %86, %cst_81 {dimension_numbers = #tpu.dot_dimension_numbers<[1], [0], [0], [1], [0, 0, 1, 1], [], []>} : vector<8x8xbf16>, vector<8x8xbf16>, vector<8x8xf32> -> vector<8x8xf32>
    %113 = arith.addf %110, %112 : vector<8x8xf32>
    %c2_82 = arith.constant 2 : index
    %c0_83 = arith.constant 0 : index
    %c0_84 = arith.constant 0 : index
    %114 = vector.load %arg9[%c2_82, %c0_83, %c0_84] : memref<4x8x8xf32, #tpu.memory_space<vmem>>, vector<1x8x8xf32>
    %115 = vector.shape_cast %114 : vector<1x8x8xf32> to vector<8x8xf32>
    %116 = vector.shape_cast %113 : vector<8x8xf32> to vector<1x8x8xf32>
    tpu.vector_store %arg9[%c2_82, %c0_83, %c0_84], %116 {strides = array<i32>} : memref<4x8x8xf32, #tpu.memory_space<vmem>>, vector<1x8x8xf32>,
    %c2_85 = arith.constant 2 : index
    %c0_86 = arith.constant 0 : index
    %c0_87 = arith.constant 0 : index
    %117 = vector.load %arg7[%c2_85, %c0_86, %c0_87] : memref<4x8x1xf32, #tpu.memory_space<vmem>>, vector<1x8x1xf32>
    %118 = vector.shape_cast %117 : vector<1x8x1xf32> to vector<8x1xf32>
    %119 = vector.shape_cast %92 : vector<8x1xf32> to vector<1x8x1xf32>
    tpu.vector_store %arg7[%c2_85, %c0_86, %c0_87], %119 {strides = array<i32>} : memref<4x8x1xf32, #tpu.memory_space<vmem>>, vector<1x8x1xf32>,
    %c0_88 = arith.constant 0 : index
    %c0_89 = arith.constant 0 : index
    %c24 = arith.constant 24 : index
    %120 = vector.load %arg3[%c0_88, %c0_89, %c24] : memref<1x8x32xbf16, #tpu.memory_space<vmem>>, vector<1x8x8xbf16>
    %121 = vector.shape_cast %120 : vector<1x8x8xbf16> to vector<8x8xbf16>
    %c0_90 = arith.constant 0 : index
    %c0_91 = arith.constant 0 : index
    %c24_92 = arith.constant 24 : index
    %122 = vector.load %arg4[%c0_90, %c0_91, %c24_92] : memref<1x8x32xbf16, #tpu.memory_space<vmem>>, vector<1x8x8xbf16>
    %123 = vector.shape_cast %122 : vector<1x8x8xbf16> to vector<8x8xbf16>
    %c0_93 = arith.constant 0 : index
    %c0_94 = arith.constant 0 : index
    %c24_95 = arith.constant 24 : index
    %124 = vector.load %arg5[%c0_93, %c0_94, %c24_95] : memref<1x8x32xbf16, #tpu.memory_space<vmem>>, vector<1x8x8xbf16>
    %125 = vector.shape_cast %124 : vector<1x8x8xbf16> to vector<8x8xbf16>
    %cst_96 = arith.constant dense<0.000000e+00> : vector<8x8xf32>
    %126 = tpu.matmul %121, %123, %cst_96 {dimension_numbers = #tpu.dot_dimension_numbers<[1], [1], [0], [0], [0, 0, 1, 0], [], []>} : vector<8x8xbf16>, vector<8x8xbf16>, vector<8x8xf32> -> vector<8x8xf32>
    %c3 = arith.constant 3 : index
    %c0_97 = arith.constant 0 : index
    %c0_98 = arith.constant 0 : index
    %127 = vector.load %arg7[%c3, %c0_97, %c0_98] : memref<4x8x1xf32, #tpu.memory_space<vmem>>, vector<1x8x1xf32>
    %128 = vector.shape_cast %127 : vector<1x8x1xf32> to vector<8x1xf32>
    %cst_99 = arith.constant dense<0xFF800000> : vector<8xf32>
    %129 = vector.multi_reduction <maximumf>, %126, %cst_99 [1] : vector<8x8xf32> to vector<8xf32>
    %130 = vector.shape_cast %129 : vector<8xf32> to vector<8x1xf32>
    %131 = arith.maximumf %128, %130 : vector<8x1xf32>
    %132 = arith.subf %128, %131 : vector<8x1xf32>
    %133 = math.exp %132 : vector<8x1xf32>
    %134 = vector.broadcast %131 : vector<8x1xf32> to vector<8x8xf32>
    %135 = arith.subf %126, %134 : vector<8x8xf32>
    %136 = math.exp %135 : vector<8x8xf32>
    %c3_100 = arith.constant 3 : index
    %c0_101 = arith.constant 0 : index
    %c0_102 = arith.constant 0 : index
    %137 = vector.load %arg8[%c3_100, %c0_101, %c0_102] : memref<4x8x1xf32, #tpu.memory_space<vmem>>, vector<1x8x1xf32>
    %138 = vector.shape_cast %137 : vector<1x8x1xf32> to vector<8x1xf32>
    %139 = arith.mulf %133, %138 : vector<8x1xf32>
    %cst_103 = arith.constant dense<0.000000e+00> : vector<8xf32>
    %140 = vector.multi_reduction <add>, %136, %cst_103 [1] : vector<8x8xf32> to vector<8xf32>
    %141 = vector.shape_cast %140 : vector<8xf32> to vector<8x1xf32>
    %142 = arith.addf %139, %141 : vector<8x1xf32>
    %c3_104 = arith.constant 3 : index
    %c0_105 = arith.constant 0 : index
    %c0_106 = arith.constant 0 : index
    %143 = vector.load %arg8[%c3_104, %c0_105, %c0_106] : memref<4x8x1xf32, #tpu.memory_space<vmem>>, vector<1x8x1xf32>
    %144 = vector.shape_cast %143 : vector<1x8x1xf32> to vector<8x1xf32>
    %145 = vector.shape_cast %142 : vector<8x1xf32> to vector<1x8x1xf32>
    tpu.vector_store %arg8[%c3_104, %c0_105, %c0_106], %145 {strides = array<i32>} : memref<4x8x1xf32, #tpu.memory_space<vmem>>, vector<1x8x1xf32>,
    %c3_107 = arith.constant 3 : index
    %c0_108 = arith.constant 0 : index
    %c0_109 = arith.constant 0 : index
    %146 = vector.load %arg9[%c3_107, %c0_108, %c0_109] : memref<4x8x8xf32, #tpu.memory_space<vmem>>, vector<1x8x8xf32>
    %147 = vector.shape_cast %146 : vector<1x8x8xf32> to vector<8x8xf32>
    %148 = vector.broadcast %133 : vector<8x1xf32> to vector<8x8xf32>
    %149 = arith.mulf %148, %147 : vector<8x8xf32>
    %150 = arith.truncf %136 : vector<8x8xf32> to vector<8x8xbf16>
    %cst_110 = arith.constant dense<0.000000e+00> : vector<8x8xf32>
    %151 = tpu.matmul %150, %125, %cst_110 {dimension_numbers = #tpu.dot_dimension_numbers<[1], [0], [0], [1], [0, 0, 1, 1], [], []>} : vector<8x8xbf16>, vector<8x8xbf16>, vector<8x8xf32> -> vector<8x8xf32>
    %152 = arith.addf %149, %151 : vector<8x8xf32>
    %c3_111 = arith.constant 3 : index
    %c0_112 = arith.constant 0 : index
    %c0_113 = arith.constant 0 : index
    %153 = vector.load %arg9[%c3_111, %c0_112, %c0_113] : memref<4x8x8xf32, #tpu.memory_space<vmem>>, vector<1x8x8xf32>
    %154 = vector.shape_cast %153 : vector<1x8x8xf32> to vector<8x8xf32>
    %155 = vector.shape_cast %152 : vector<8x8xf32> to vector<1x8x8xf32>
    tpu.vector_store %arg9[%c3_111, %c0_112, %c0_113], %155 {strides = array<i32>} : memref<4x8x8xf32, #tpu.memory_space<vmem>>, vector<1x8x8xf32>,
    %c3_114 = arith.constant 3 : index
    %c0_115 = arith.constant 0 : index
    %c0_116 = arith.constant 0 : index
    %156 = vector.load %arg7[%c3_114, %c0_115, %c0_116] : memref<4x8x1xf32, #tpu.memory_space<vmem>>, vector<1x8x1xf32>
    %157 = vector.shape_cast %156 : vector<1x8x1xf32> to vector<8x1xf32>
    %158 = vector.shape_cast %131 : vector<8x1xf32> to vector<1x8x1xf32>
    tpu.vector_store %arg7[%c3_114, %c0_115, %c0_116], %158 {strides = array<i32>} : memref<4x8x1xf32, #tpu.memory_space<vmem>>, vector<1x8x1xf32>,
    %c0_i32_117 = arith.constant 0 : i32
    %159 = arith.cmpi eq, %arg2, %c0_i32_117 : i32
    %160 = arith.extui %159 : i1 to i32
    %c0_i32_118 = arith.constant 0 : i32
    %161 = arith.cmpi ne, %160, %c0_i32_118 : i32
    scf.if %161 {
      %c0_119 = arith.constant 0 : index
      %c0_120 = arith.constant 0 : index
      %c0_121 = arith.constant 0 : index
      %162 = vector.load %arg8[%c0_119, %c0_120, %c0_121] : memref<4x8x1xf32, #tpu.memory_space<vmem>>, vector<1x8x1xf32>
      %163 = vector.shape_cast %162 : vector<1x8x1xf32> to vector<8x1xf32>
      %164 = tpu.reciprocal %163 {approx = true} : vector<8x1xf32> -> vector<8x1xf32>
      %c0_122 = arith.constant 0 : index
      %c0_123 = arith.constant 0 : index
      %c0_124 = arith.constant 0 : index
      %165 = vector.load %arg9[%c0_122, %c0_123, %c0_124] : memref<4x8x8xf32, #tpu.memory_space<vmem>>, vector<1x8x8xf32>
      %166 = vector.shape_cast %165 : vector<1x8x8xf32> to vector<8x8xf32>
      %167 = vector.broadcast %164 : vector<8x1xf32> to vector<8x8xf32>
      %168 = arith.mulf %166, %167 : vector<8x8xf32>
      %c0_125 = arith.constant 0 : index
      %c0_126 = arith.constant 0 : index
      %c0_127 = arith.constant 0 : index
      %169 = vector.load %arg6[%c0_125, %c0_126, %c0_127] : memref<1x8x32xf32, #tpu.memory_space<vmem>>, vector<1x8x8xf32>
      %170 = vector.shape_cast %169 : vector<1x8x8xf32> to vector<8x8xf32>
      %171 = vector.shape_cast %168 : vector<8x8xf32> to vector<1x8x8xf32>
      tpu.vector_store %arg6[%c0_125, %c0_126, %c0_127], %171 {strides = array<i32>} : memref<1x8x32xf32, #tpu.memory_space<vmem>>, vector<1x8x8xf32>,
      %c1_128 = arith.constant 1 : index
      %c0_129 = arith.constant 0 : index
      %c0_130 = arith.constant 0 : index
      %172 = vector.load %arg8[%c1_128, %c0_129, %c0_130] : memref<4x8x1xf32, #tpu.memory_space<vmem>>, vector<1x8x1xf32>
      %173 = vector.shape_cast %172 : vector<1x8x1xf32> to vector<8x1xf32>
      %174 = tpu.reciprocal %173 {approx = true} : vector<8x1xf32> -> vector<8x1xf32>
      %c1_131 = arith.constant 1 : index
      %c0_132 = arith.constant 0 : index
      %c0_133 = arith.constant 0 : index
      %175 = vector.load %arg9[%c1_131, %c0_132, %c0_133] : memref<4x8x8xf32, #tpu.memory_space<vmem>>, vector<1x8x8xf32>
      %176 = vector.shape_cast %175 : vector<1x8x8xf32> to vector<8x8xf32>
      %177 = vector.broadcast %174 : vector<8x1xf32> to vector<8x8xf32>
      %178 = arith.mulf %176, %177 : vector<8x8xf32>
      %c0_134 = arith.constant 0 : index
      %c0_135 = arith.constant 0 : index
      %c8_136 = arith.constant 8 : index
      %179 = vector.load %arg6[%c0_134, %c0_135, %c8_136] : memref<1x8x32xf32, #tpu.memory_space<vmem>>, vector<1x8x8xf32>
      %180 = vector.shape_cast %179 : vector<1x8x8xf32> to vector<8x8xf32>
      %181 = vector.shape_cast %178 : vector<8x8xf32> to vector<1x8x8xf32>
      tpu.vector_store %arg6[%c0_134, %c0_135, %c8_136], %181 {strides = array<i32>} : memref<1x8x32xf32, #tpu.memory_space<vmem>>, vector<1x8x8xf32>,
      %c2_137 = arith.constant 2 : index
      %c0_138 = arith.constant 0 : index
      %c0_139 = arith.constant 0 : index
      %182 = vector.load %arg8[%c2_137, %c0_138, %c0_139] : memref<4x8x1xf32, #tpu.memory_space<vmem>>, vector<1x8x1xf32>
      %183 = vector.shape_cast %182 : vector<1x8x1xf32> to vector<8x1xf32>
      %184 = tpu.reciprocal %183 {approx = true} : vector<8x1xf32> -> vector<8x1xf32>
      %c2_140 = arith.constant 2 : index
      %c0_141 = arith.constant 0 : index
      %c0_142 = arith.constant 0 : index
      %185 = vector.load %arg9[%c2_140, %c0_141, %c0_142] : memref<4x8x8xf32, #tpu.memory_space<vmem>>, vector<1x8x8xf32>
      %186 = vector.shape_cast %185 : vector<1x8x8xf32> to vector<8x8xf32>
      %187 = vector.broadcast %184 : vector<8x1xf32> to vector<8x8xf32>
      %188 = arith.mulf %186, %187 : vector<8x8xf32>
      %c0_143 = arith.constant 0 : index
      %c0_144 = arith.constant 0 : index
      %c16_145 = arith.constant 16 : index
      %189 = vector.load %arg6[%c0_143, %c0_144, %c16_145] : memref<1x8x32xf32, #tpu.memory_space<vmem>>, vector<1x8x8xf32>
      %190 = vector.shape_cast %189 : vector<1x8x8xf32> to vector<8x8xf32>
      %191 = vector.shape_cast %188 : vector<8x8xf32> to vector<1x8x8xf32>
      tpu.vector_store %arg6[%c0_143, %c0_144, %c16_145], %191 {strides = array<i32>} : memref<1x8x32xf32, #tpu.memory_space<vmem>>, vector<1x8x8xf32>,
      %c3_146 = arith.constant 3 : index
      %c0_147 = arith.constant 0 : index
      %c0_148 = arith.constant 0 : index
      %192 = vector.load %arg8[%c3_146, %c0_147, %c0_148] : memref<4x8x1xf32, #tpu.memory_space<vmem>>, vector<1x8x1xf32>
      %193 = vector.shape_cast %192 : vector<1x8x1xf32> to vector<8x1xf32>
      %194 = tpu.reciprocal %193 {approx = true} : vector<8x1xf32> -> vector<8x1xf32>
      %c3_149 = arith.constant 3 : index
      %c0_150 = arith.constant 0 : index
      %c0_151 = arith.constant 0 : index
      %195 = vector.load %arg9[%c3_149, %c0_150, %c0_151] : memref<4x8x8xf32, #tpu.memory_space<vmem>>, vector<1x8x8xf32>
      %196 = vector.shape_cast %195 : vector<1x8x8xf32> to vector<8x8xf32>
      %197 = vector.broadcast %194 : vector<8x1xf32> to vector<8x8xf32>
      %198 = arith.mulf %196, %197 : vector<8x8xf32>
      %c0_152 = arith.constant 0 : index
      %c0_153 = arith.constant 0 : index
      %c24_154 = arith.constant 24 : index
      %199 = vector.load %arg6[%c0_152, %c0_153, %c24_154] : memref<1x8x32xf32, #tpu.memory_space<vmem>>, vector<1x8x8xf32>
      %200 = vector.shape_cast %199 : vector<1x8x8xf32> to vector<8x8xf32>
      %201 = vector.shape_cast %198 : vector<8x8xf32> to vector<1x8x8xf32>
      tpu.vector_store %arg6[%c0_152, %c0_153, %c24_154], %201 {strides = array<i32>} : memref<1x8x32xf32, #tpu.memory_space<vmem>>, vector<1x8x8xf32>,
    } else {
    }
    return
  }
  func.func @transform_0(%arg0: i32, %arg1: i32, %arg2: i32) -> (i32, i32, i32) {
    %c0_i32 = arith.constant 0 : i32
    %c0_i32_0 = arith.constant 0 : i32
    return %arg0, %arg1, %c0_i32 : i32, i32, i32
  }
  func.func @transform_1(%arg0: i32, %arg1: i32, %arg2: i32) -> (i32, i32, i32) {
    %c0_i32 = arith.constant 0 : i32
    %c0_i32_0 = arith.constant 0 : i32
    return %arg0, %arg2, %c0_i32 : i32, i32, i32
  }
  func.func @transform_2(%arg0: i32, %arg1: i32, %arg2: i32) -> (i32, i32, i32) {
    %c0_i32 = arith.constant 0 : i32
    %c0_i32_0 = arith.constant 0 : i32
    return %arg0, %arg2, %c0_i32 : i32, i32, i32
  }
  func.func @transform_3(%arg0: i32, %arg1: i32, %arg2: i32) -> (i32, i32, i32) {
    %c0_i32 = arith.constant 0 : i32
    %c0_i32_0 = arith.constant 0 : i32
    return %arg0, %arg1, %c0_i32 : i32, i32, i32
  }
}

</mosaic_0001>

<llo_original>
// kernel: multi_head_attention.3
$region0: #{multi_head_attention.3}
  #allocation0 [shape = 'u32[]', space=smem, size = 0x4, offset = 0x4, fixed_abs, tag = 'smem constant byte address 0x4 - core index']
  #allocation1 [shape = 'u32[72,128]{1,0:T(1,128)}', space=vmem, size = 0x9000, scoped, tag = 'internal scratch']
  %s0 = inlined_call_operand.hbm [shape: f32[16,32], index: 0, kind: input, shape index: {}]
  %s1 = inlined_call_operand.hbm [shape: f32[16,32], index: 1, kind: input, shape index: {}]
  %s2 = inlined_call_operand.hbm [shape: f32[16,32], index: 2, kind: input, shape index: {}]
  %s3 = inlined_call_operand.hbm [shape: f32[32,32], index: 3, kind: input, shape index: {}]
  %s4 = inlined_call_operand.hbm [shape: f32[32,32], index: 4, kind: input, shape index: {}]
  %s5 = inlined_call_operand.hbm [shape: f32[32,32], index: 5, kind: input, shape index: {}]
  %s6 = inlined_call_operand.vmem [shape: bf16[16,32], index: 6, kind: output, shape index: {0}]
  %s7 = inlined_call_operand.vmem [shape: bf16[16,32], index: 7, kind: output, shape index: {1}]
  %s8 = inlined_call_operand.vmem [shape: bf16[16,32], index: 8, kind: output, shape index: {2}]
  %9 = xla_tuple %s6, %s7, %s8
  %s10 = sld [smem:[#allocation0]]
  $region74: #{multi_head_attention.3} parent=0
    _
  %s12 = ssub.s32 1, %s10
  %s13 = scalar_select 0, %s12, %s10
  $region1: #{multi_head_attention.3} parent=0
    #allocation2 [shape = 'u8[8192]{0}', space=vmem, size = 0x2000, scoped, tag = 'input window, operand 0, single buffered']
    #allocation3 [shape = 's32[1]{0}', space=sflag, size = 0x4, scoped, tag = 'scoped memory for multi_head_attention.3']
    #allocation4 [shape = 'u8[8192]{0}', space=vmem, size = 0x2000, scoped, tag = 'input window, operand 1, single buffered']
    #allocation5 [shape = 's32[1]{0}', space=sflag, size = 0x4, scoped, tag = 'scoped memory for multi_head_attention.3']
    #allocation6 [shape = 'u8[8192]{0}', space=vmem, size = 0x2000, scoped, tag = 'input window, operand 2, single buffered']
    #allocation7 [shape = 'u8[16384]{0}', space=vmem, size = 0x4000, scoped, tag = 'input window, operand 3, single buffered']
    #allocation8 [shape = 's32[1]{0}', space=sflag, size = 0x4, scoped, tag = 'scoped memory for multi_head_attention.3']
    #allocation9 [shape = 'u8[16384]{0}', space=vmem, size = 0x4000, scoped, tag = 'input window, operand 4, single buffered']
    #allocation10 [shape = 'u8[16384]{0}', space=vmem, size = 0x4000, scoped, tag = 'input window, operand 5, single buffered']
    #allocation11 [shape = 's32[1]{0}', space=sflag, size = 0x4, scoped, tag = 'scoped memory for multi_head_attention.3']
    %14 = vsyncpa [#allocation3], 0
    %15 = vsyncpa [#allocation5], 0
    %16 = vsyncpa [#allocation8], 0
    %17 = vsyncpa [#allocation11], 0
    // Predicated region
    $region2: #{multi_head_attention.3} parent=1 // pred_check
      _
    $region3: #{multi_head_attention.3} parent=1 // pred_check_branch
      %19 = sbr.rel (0) target = $region5
    $region4: #{multi_head_attention.3} parent=1 // pred_region
      %21 = vsyncadd [#allocation3], 0
      %s22 = sshll.u32 %s0, 4
      %s23 = int_to_ptr.hbm [resolvable:$true] %s22
      %s24 = sshll.u32 [#allocation2], 4
      %s25 = int_to_ptr.vmem [resolvable:$true] %s24
      %30 = dma.hbm_to_vmem [thread:$0]  %s23, 256, %s25, [#allocation3], 128, 128, 8
    $region5: #{multi_head_attention.3} parent=1 // pred_fallthru
      _
    // Predicated region
    $region6: #{multi_head_attention.3} parent=1 // pred_check
      _
    $region7: #{multi_head_attention.3} parent=1 // pred_check_branch
      %32 = sbr.rel (0) target = $region9
    $region8: #{multi_head_attention.3} parent=1 // pred_region
      %34 = vsyncadd [#allocation5], 0
      %s35 = sshll.u32 %s1, 4
      %s36 = int_to_ptr.hbm [resolvable:$true] %s35
      %s37 = sshll.u32 [#allocation4], 4
      %s38 = int_to_ptr.vmem [resolvable:$true] %s37
      %43 = dma.hbm_to_vmem [thread:$0]  %s36, 256, %s38, [#allocation5], 128, 128, 8
    $region9: #{multi_head_attention.3} parent=1 // pred_fallthru
      _
    // Predicated region
    $region10: #{multi_head_attention.3} parent=1 // pred_check
      _
    $region11: #{multi_head_attention.3} parent=1 // pred_check_branch
      %45 = sbr.rel (0) target = $region13
    $region12: #{multi_head_attention.3} parent=1 // pred_region
      %47 = vsyncadd [#allocation5], 0
      %s48 = sshll.u32 %s2, 4
      %s49 = int_to_ptr.hbm [resolvable:$true] %s48
      %s50 = sshll.u32 [#allocation6], 4
      %s51 = int_to_ptr.vmem [resolvable:$true] %s50
      %56 = dma.hbm_to_vmem [thread:$0]  %s49, 256, %s51, [#allocation5], 128, 128, 8
    $region13: #{multi_head_attention.3} parent=1 // pred_fallthru
      _
    // Predicated region
    $region14: #{multi_head_attention.3} parent=1 // pred_check
      _
    $region15: #{multi_head_attention.3} parent=1 // pred_check_branch
      %58 = sbr.rel (0) target = $region17
    $region16: #{multi_head_attention.3} parent=1 // pred_region
      %60 = vsyncadd [#allocation8], 0
      %s61 = sshll.u32 %s3, 4
      %s62 = int_to_ptr.hbm [resolvable:$true] %s61
      %s63 = sshll.u32 [#allocation7], 4
      %s64 = int_to_ptr.vmem [resolvable:$true] %s63
      %69 = dma.hbm_to_vmem [thread:$0]  %s62, 512, %s64, [#allocation8], 128, 128, 8
    $region17: #{multi_head_attention.3} parent=1 // pred_fallthru
      _
    // Predicated region
    $region18: #{multi_head_attention.3} parent=1 // pred_check
      _
    $region19: #{multi_head_attention.3} parent=1 // pred_check_branch
      %71 = sbr.rel (0) target = $region21
    $region20: #{multi_head_attention.3} parent=1 // pred_region
      %73 = vsyncadd [#allocation8], 0
      %s74 = sshll.u32 %s4, 4
      %s75 = int_to_ptr.hbm [resolvable:$true] %s74
      %s76 = sshll.u32 [#allocation9], 4
      %s77 = int_to_ptr.vmem [resolvable:$true] %s76
      %82 = dma.hbm_to_vmem [thread:$0]  %s75, 512, %s77, [#allocation8], 128, 128, 8
    $region21: #{multi_head_attention.3} parent=1 // pred_fallthru
      _
    // Predicated region
    $region22: #{multi_head_attention.3} parent=1 // pred_check
      _
    $region23: #{multi_head_attention.3} parent=1 // pred_check_branch
      %84 = sbr.rel (0) target = $region25
    $region24: #{multi_head_attention.3} parent=1 // pred_region
      %86 = vsyncadd [#allocation11], 0
      %s87 = sshll.u32 %s5, 4
      %s88 = int_to_ptr.hbm [resolvable:$true] %s87
      %s89 = sshll.u32 [#allocation10], 4
      %s90 = int_to_ptr.vmem [resolvable:$true] %s89
      %95 = dma.hbm_to_vmem [thread:$0]  %s88, 512, %s90, [#allocation11], 128, 128, 8
    $region25: #{multi_head_attention.3} parent=1 // pred_fallthru
      _
    // Predicated region
    $region26: #{multi_head_attention.3} parent=1 // pred_check
      _
    $region27: #{multi_head_attention.3} parent=1 // pred_check_branch
      %97 = sbr.rel (0) target = $region29
    $region28: #{multi_head_attention.3} parent=1 // pred_region
      %99 = dma.done [#allocation3], 256
    $region29: #{multi_head_attention.3} parent=1 // pred_fallthru
      _
    // Predicated region
    $region30: #{multi_head_attention.3} parent=1 // pred_check
      _
    $region31: #{multi_head_attention.3} parent=1 // pred_check_branch
      %101 = sbr.rel (0) target = $region33
    $region32: #{multi_head_attention.3} parent=1 // pred_region
      %103 = dma.done [#allocation5], 256
    $region33: #{multi_head_attention.3} parent=1 // pred_fallthru
      _
    // Predicated region
    $region34: #{multi_head_attention.3} parent=1 // pred_check
      _
    $region35: #{multi_head_attention.3} parent=1 // pred_check_branch
      %105 = sbr.rel (0) target = $region37
    $region36: #{multi_head_attention.3} parent=1 // pred_region
      %107 = dma.done [#allocation5], 256
    $region37: #{multi_head_attention.3} parent=1 // pred_fallthru
      _
    // Predicated region
    $region38: #{multi_head_attention.3} parent=1 // pred_check
      _
    $region39: #{multi_head_attention.3} parent=1 // pred_check_branch
      %109 = sbr.rel (0) target = $region41
    $region40: #{multi_head_attention.3} parent=1 // pred_region
      %111 = dma.done [#allocation8], 512
    $region41: #{multi_head_attention.3} parent=1 // pred_fallthru
      _
    // Predicated region
    $region42: #{multi_head_attention.3} parent=1 // pred_check
      _
    $region43: #{multi_head_attention.3} parent=1 // pred_check_branch
      %113 = sbr.rel (0) target = $region45
    $region44: #{multi_head_attention.3} parent=1 // pred_region
      %115 = dma.done [#allocation8], 512
    $region45: #{multi_head_attention.3} parent=1 // pred_fallthru
      _
    // Predicated region
    $region46: #{multi_head_attention.3} parent=1 // pred_check
      _
    $region47: #{multi_head_attention.3} parent=1 // pred_check_branch
      %117 = sbr.rel (0) target = $region49
    $region48: #{multi_head_attention.3} parent=1 // pred_region
      %119 = dma.done [#allocation11], 512
    $region49: #{multi_head_attention.3} parent=1 // pred_fallthru
      _
    %v120 = vld [vmem:[#allocation2] sm:$0xff]
    %v121 = vld [vmem:[#allocation2 + $0x8] sm:$0xff]
    %v122 = vld [vmem:[#allocation7] sm:$0xff]
    %v123 = vld [vmem:[#allocation7 + $0x8] sm:$0xff]
    %v124 = vld [vmem:[#allocation7 + $0x10] sm:$0xff]
    %v125 = vld [vmem:[#allocation7 + $0x18] sm:$0xff]
    %vm126 = vcmask 261120
    %v128 = vsel %vm126, %v120, 0
    %v131 = vsel %vm126, %v121, 0
    %v134 = vsel %vm126, %v122, 0
    %v137 = vsel %vm126, %v123, 0
    %v140 = vsel %vm126, %v124, 0
    %v143 = vsel %vm126, %v125, 0
    %145 = vmatpush.xpose.msra.mxu0 0.0
    %146 = vmatpush.xpose.msra.mxu0 0.0
    %147 = vmatpush.xpose.msra.mxu0 0.0
    %148 = vmatpush.xpose.msra.mxu0 0.0
    %149 = vmatpush.xpose.msra.mxu0 0.0
    %150 = vmatpush.xpose.msra.mxu0 0.0
    %151 = vmatpush.xpose.msra.mxu0 0.0
    %152 = vmatpush.xpose.msra.mxu0 0.0
    %153 = vmatpush.xpose.msra.mxu0 0.0
    %154 = vmatpush.xpose.msra.mxu0 0.0
    %155 = vmatpush.xpose.msra.mxu0 0.0
    %156 = vmatpush.xpose.msra.mxu0 0.0
    %157 = vmatpush.xpose.msra.mxu0 %v143
    %158 = vmatpush.xpose.msra.mxu0 %v140
    %159 = vmatpush.xpose.msra.mxu0 %v137
    %160 = vmatpush.xpose.msra.mxu0 %v134
    %161 = vmatmul.f32.gmra.mxu0 %v128
    %v162 = vpop.f32.mrf.mxu0
    %v163 = vadd.f32 0.0, %v162
    %164 = vmatmul.f32.gmra.mxu0 %v131
    %v165 = vpop.f32.mrf.mxu0
    %v166 = vadd.f32 0.0, %v165
    %167 = vdwg.mxu0
    %v168 = vmul.f32 %v163, 0.35355338
    %v169 = vmul.f32 %v166, 0.35355338
    %v170 = vpack.c.bf16 %v168, %v168
    %v171 = vpack.c.bf16 %v169, %v169
    %vm172 = vcmask 257024
    %173 = vst.msk [vmem:[%s6] sm:$0xf] %vm172, %v170
    %174 = vst.msk [vmem:[%s6 + $0x4] sm:$0xf] %vm172, %v171
    %v175 = vld [vmem:[#allocation4] sm:$0xff]
    %v176 = vld [vmem:[#allocation4 + $0x8] sm:$0xff]
    %v177 = vld [vmem:[#allocation9] sm:$0xff]
    %v178 = vld [vmem:[#allocation9 + $0x8] sm:$0xff]
    %v179 = vld [vmem:[#allocation9 + $0x10] sm:$0xff]
    %v180 = vld [vmem:[#allocation9 + $0x18] sm:$0xff]
    %v182 = vsel %vm126, %v175, 0
    %v185 = vsel %vm126, %v176, 0
    %v188 = vsel %vm126, %v177, 0
    %v191 = vsel %vm126, %v178, 0
    %v194 = vsel %vm126, %v179, 0
    %v197 = vsel %vm126, %v180, 0
    %199 = vmatpush.xpose.msra.mxu0 0.0
    %200 = vmatpush.xpose.msra.mxu0 0.0
    %201 = vmatpush.xpose.msra.mxu0 0.0
    %202 = vmatpush.xpose.msra.mxu0 0.0
    %203 = vmatpush.xpose.msra.mxu0 0.0
    %204 = vmatpush.xpose.msra.mxu0 0.0
    %205 = vmatpush.xpose.msra.mxu0 0.0
    %206 = vmatpush.xpose.msra.mxu0 0.0
    %207 = vmatpush.xpose.msra.mxu0 0.0
    %208 = vmatpush.xpose.msra.mxu0 0.0
    %209 = vmatpush.xpose.msra.mxu0 0.0
    %210 = vmatpush.xpose.msra.mxu0 0.0
    %211 = vmatpush.xpose.msra.mxu0 %v197
    %212 = vmatpush.xpose.msra.mxu0 %v194
    %213 = vmatpush.xpose.msra.mxu0 %v191
    %214 = vmatpush.xpose.msra.mxu0 %v188
    %215 = vmatmul.f32.gmra.mxu0 %v182
    %v216 = vpop.f32.mrf.mxu0
    %v217 = vadd.f32 0.0, %v216
    %218 = vmatmul.f32.gmra.mxu0 %v185
    %v219 = vpop.f32.mrf.mxu0
    %v220 = vadd.f32 0.0, %v219
    %221 = vdwg.mxu0
    %v222 = vpack.c.bf16 %v217, %v217
    %v223 = vpack.c.bf16 %v220, %v220
    %224 = vst.msk [vmem:[%s7] sm:$0xf] %vm172, %v222
    %225 = vst.msk [vmem:[%s7 + $0x4] sm:$0xf] %vm172, %v223
    %v226 = vld [vmem:[#allocation6] sm:$0xff]
    %v227 = vld [vmem:[#allocation6 + $0x8] sm:$0xff]
    %v228 = vld [vmem:[#allocation10] sm:$0xff]
    %v229 = vld [vmem:[#allocation10 + $0x8] sm:$0xff]
    %v230 = vld [vmem:[#allocation10 + $0x10] sm:$0xff]
    %v231 = vld [vmem:[#allocation10 + $0x18] sm:$0xff]
    %v233 = vsel %vm126, %v226, 0
    %v236 = vsel %vm126, %v227, 0
    %v239 = vsel %vm126, %v228, 0
    %v242 = vsel %vm126, %v229, 0
    %v245 = vsel %vm126, %v230, 0
    %v248 = vsel %vm126, %v231, 0
    %250 = vmatpush.xpose.msra.mxu0 0.0
    %251 = vmatpush.xpose.msra.mxu0 0.0
    %252 = vmatpush.xpose.msra.mxu0 0.0
    %253 = vmatpush.xpose.msra.mxu0 0.0
    %254 = vmatpush.xpose.msra.mxu0 0.0
    %255 = vmatpush.xpose.msra.mxu0 0.0
    %256 = vmatpush.xpose.msra.mxu0 0.0
    %257 = vmatpush.xpose.msra.mxu0 0.0
    %258 = vmatpush.xpose.msra.mxu0 0.0
    %259 = vmatpush.xpose.msra.mxu0 0.0
    %260 = vmatpush.xpose.msra.mxu0 0.0
    %261 = vmatpush.xpose.msra.mxu0 0.0
    %262 = vmatpush.xpose.msra.mxu0 %v248
    %263 = vmatpush.xpose.msra.mxu0 %v245
    %264 = vmatpush.xpose.msra.mxu0 %v242
    %265 = vmatpush.xpose.msra.mxu0 %v239
    %266 = vmatmul.f32.gmra.mxu0 %v233
    %v267 = vpop.f32.mrf.mxu0
    %v268 = vadd.f32 0.0, %v267
    %269 = vmatmul.f32.gmra.mxu0 %v236
    %v270 = vpop.f32.mrf.mxu0
    %v271 = vadd.f32 0.0, %v270
    %272 = vdwg.mxu0
    %v273 = vpack.c.bf16 %v268, %v268
    %v274 = vpack.c.bf16 %v271, %v271
    %275 = vst.msk [vmem:[%s8] sm:$0xf] %vm172, %v273
    %276 = vst.msk [vmem:[%s8 + $0x4] sm:$0xf] %vm172, %v274
    // Predicated region
    $region50: #{multi_head_attention.3} parent=1 // pred_check
      _
    $region51: #{multi_head_attention.3} parent=1 // pred_check_branch
      %278 = sbr.rel (0) target = $region53
    $region52: #{multi_head_attention.3} parent=1 // pred_region
      _
    $region53: #{multi_head_attention.3} parent=1 // pred_fallthru
      _
    // Predicated region
    $region54: #{multi_head_attention.3} parent=1 // pred_check
      _
    $region55: #{multi_head_attention.3} parent=1 // pred_check_branch
      %280 = sbr.rel (0) target = $region57
    $region56: #{multi_head_attention.3} parent=1 // pred_region
      _
    $region57: #{multi_head_attention.3} parent=1 // pred_fallthru
      _
    // Predicated region
    $region58: #{multi_head_attention.3} parent=1 // pred_check
      _
    $region59: #{multi_head_attention.3} parent=1 // pred_check_branch
      %282 = sbr.rel (0) target = $region61
    $region60: #{multi_head_attention.3} parent=1 // pred_region
      _
    $region61: #{multi_head_attention.3} parent=1 // pred_fallthru
      _
    // Predicated region
    $region62: #{multi_head_attention.3} parent=1 // pred_check
      _
    $region63: #{multi_head_attention.3} parent=1 // pred_check_branch
      %284 = sbr.rel (0) target = $region65
    $region64: #{multi_head_attention.3} parent=1 // pred_region
      _
    $region65: #{multi_head_attention.3} parent=1 // pred_fallthru
      _
    // Predicated region
    $region66: #{multi_head_attention.3} parent=1 // pred_check
      _
    $region67: #{multi_head_attention.3} parent=1 // pred_check_branch
      %286 = sbr.rel (0) target = $region69
    $region68: #{multi_head_attention.3} parent=1 // pred_region
      _
    $region69: #{multi_head_attention.3} parent=1 // pred_fallthru
      _
    // Predicated region
    $region70: #{multi_head_attention.3} parent=1 // pred_check
      _
    $region71: #{multi_head_attention.3} parent=1 // pred_check_branch
      %288 = sbr.rel (0) target = $region73
    $region72: #{multi_head_attention.3} parent=1 // pred_region
      _
    $region73: #{multi_head_attention.3} parent=1 // pred_fallthru
      _
    %289 = vsyncpa [#allocation3], 1
    %290 = vsyncpa [#allocation5], 1
    %291 = vsyncpa [#allocation8], 1
    %292 = vsyncpa [#allocation11], 1

// kernel: multi_head_attention.5
$region0: #{multi_head_attention.5}
  #allocation0 [shape = 'u32[]', space=smem, size = 0x4, offset = 0x4, fixed_abs, tag = 'smem constant byte address 0x4 - core index']
  #allocation1 [shape = 'u32[72,128]{1,0:T(1,128)}', space=vmem, size = 0x9000, scoped, tag = 'internal scratch']
  %s0 = inlined_call_operand.vmem [shape: f32[16,32], index: 0, kind: input, shape index: {}]
  %s1 = inlined_call_operand.vmem [shape: f32[32,32], index: 1, kind: input, shape index: {}]
  %s2 = inlined_call_operand.hbm [shape: f32[16,32], index: 2, kind: output, shape index: {}]
  %s3 = sld [smem:[#allocation0]]
  $region18: #{multi_head_attention.5} parent=0
    _
  %s5 = ssub.s32 1, %s3
  %s6 = scalar_select 0, %s5, %s3
  $region1: #{multi_head_attention.5} parent=0
    #allocation2 [shape = 'u8[8192]{0}', space=vmem, size = 0x2000, scoped, tag = 'output window, operand 0, single buffered']
    #allocation3 [shape = 's32[1]{0}', space=sflag, size = 0x4, scoped, tag = 'scoped memory for multi_head_attention.5']
    %7 = vsyncpa [#allocation3], 0
    // Predicated region
    $region2: #{multi_head_attention.5} parent=1 // pred_check
      _
    $region3: #{multi_head_attention.5} parent=1 // pred_check_branch
      %9 = sbr.rel (0) target = $region5
    $region4: #{multi_head_attention.5} parent=1 // pred_region
      _
    $region5: #{multi_head_attention.5} parent=1 // pred_fallthru
      _
    // Predicated region
    $region6: #{multi_head_attention.5} parent=1 // pred_check
      _
    $region7: #{multi_head_attention.5} parent=1 // pred_check_branch
      %11 = sbr.rel (0) target = $region9
    $region8: #{multi_head_attention.5} parent=1 // pred_region
      _
    $region9: #{multi_head_attention.5} parent=1 // pred_fallthru
      _
    %v12 = vld [vmem:[%s0] sm:$0xff]
    %v13 = vld [vmem:[%s0 + $0x8] sm:$0xff]
    %v14 = vld [vmem:[%s1] sm:$0xff]
    %v15 = vld [vmem:[%s1 + $0x8] sm:$0xff]
    %v16 = vld [vmem:[%s1 + $0x10] sm:$0xff]
    %v17 = vld [vmem:[%s1 + $0x18] sm:$0xff]
    %vm18 = vcmask 261120
    %v20 = vsel %vm18, %v12, 0
    %v23 = vsel %vm18, %v13, 0
    %v26 = vsel %vm18, %v14, 0
    %v29 = vsel %vm18, %v15, 0
    %v32 = vsel %vm18, %v16, 0
    %v35 = vsel %vm18, %v17, 0
    %37 = vmatpush.xpose.msra.mxu0 0.0
    %38 = vmatpush.xpose.msra.mxu0 0.0
    %39 = vmatpush.xpose.msra.mxu0 0.0
    %40 = vmatpush.xpose.msra.mxu0 0.0
    %41 = vmatpush.xpose.msra.mxu0 0.0
    %42 = vmatpush.xpose.msra.mxu0 0.0
    %43 = vmatpush.xpose.msra.mxu0 0.0
    %44 = vmatpush.xpose.msra.mxu0 0.0
    %45 = vmatpush.xpose.msra.mxu0 0.0
    %46 = vmatpush.xpose.msra.mxu0 0.0
    %47 = vmatpush.xpose.msra.mxu0 0.0
    %48 = vmatpush.xpose.msra.mxu0 0.0
    %49 = vmatpush.xpose.msra.mxu0 %v35
    %50 = vmatpush.xpose.msra.mxu0 %v32
    %51 = vmatpush.xpose.msra.mxu0 %v29
    %52 = vmatpush.xpose.msra.mxu0 %v26
    %53 = vmatmul.f32.gmra.mxu0 %v20
    %v54 = vpop.f32.mrf.mxu0
    %v55 = vadd.f32 0.0, %v54
    %56 = vmatmul.f32.gmra.mxu0 %v23
    %v57 = vpop.f32.mrf.mxu0
    %v58 = vadd.f32 0.0, %v57
    %59 = vdwg.mxu0
    %60 = vst.msk [vmem:[#allocation2] sm:$0xff] %vm18, %v55
    %61 = vst.msk [vmem:[#allocation2 + $0x8] sm:$0xff] %vm18, %v58
    // Predicated region
    $region10: #{multi_head_attention.5} parent=1 // pred_check
      _
    $region11: #{multi_head_attention.5} parent=1 // pred_check_branch
      %63 = sbr.rel (0) target = $region13
    $region12: #{multi_head_attention.5} parent=1 // pred_region
      %65 = vsyncadd [#allocation3], 0
      %s66 = sshll.u32 [#allocation2], 4
      %s67 = int_to_ptr.vmem [resolvable:$true] %s66
      %s68 = sshll.u32 %s2, 4
      %s69 = int_to_ptr.hbm [resolvable:$true] %s68
      %74 = dma.vmem_to_hbm [thread:$0]  %s67, 256, %s69, [#allocation3], 128, 128, 8
    $region13: #{multi_head_attention.5} parent=1 // pred_fallthru
      _
    // Predicated region
    $region14: #{multi_head_attention.5} parent=1 // pred_check
      _
    $region15: #{multi_head_attention.5} parent=1 // pred_check_branch
      %76 = sbr.rel (0) target = $region17
    $region16: #{multi_head_attention.5} parent=1 // pred_region
      %78 = dma.done [#allocation3], 256
    $region17: #{multi_head_attention.5} parent=1 // pred_fallthru
      _
    %79 = vsyncpa [#allocation3], 1

// kernel: multi_head_attention.4
$region0: #{multi_head_attention.4}
  #allocation0 [shape = 'u32[]', space=smem, size = 0x4, offset = 0x4, fixed_abs, tag = 'smem constant byte address 0x4 - core index']
  #allocation1 [shape = 'u32[72,128]{1,0:T(1,128)}', space=vmem, size = 0x9000, scoped, tag = 'internal scratch']
  #allocation2 [shape = 'f32[4,8,1]{2,1,0:T(8,128)}', space=vmem, size = 0x4000, scoped, tag = 'scratch operand']
  #allocation3 [shape = 'f32[4,8,1]{2,1,0:T(8,128)}', space=vmem, size = 0x4000, scoped, tag = 'scratch operand']
  #allocation4 [shape = 'f32[4,8,8]{2,1,0:T(8,128)}', space=vmem, size = 0x4000, scoped, tag = 'scratch operand']
  %s0 = inlined_call_operand.vmem [shape: bf16[2,8,32], index: 0, kind: input, shape index: {}]
  %s1 = inlined_call_operand.vmem [shape: bf16[2,8,32], index: 1, kind: input, shape index: {}]
  %s2 = inlined_call_operand.vmem [shape: bf16[2,8,32], index: 2, kind: input, shape index: {}]
  %s3 = inlined_call_operand.vmem [shape: f32[2,8,32], index: 3, kind: output, shape index: {}]
  %s4 = sld [smem:[#allocation0]]
  $region53: #{multi_head_attention.4} parent=0
    _
  %s6 = ssub.s32 1, %s4
  %s7 = scalar_select 0, %s6, %s4
  loop: start=0, step=1, limit=4
  $region2: #{multi_head_attention.4} parent=0 // loop_pre_header
    _
  $region3: #{multi_head_attention.4} parent=0 // loop_header
    %s9 = sphi 0, %s13
    %p10 = scmp.ge.s32.totalorder %s9, 4
    %s16 = sphi 0, %s35
    %s17 = sphi 0, %s31
    %s18 = sphi 0, %s27
    %s19 = sphi 0, %s16
    %s20 = sphi 0, %s17
    %s21 = sphi 0, %s18
    %s22 = sphi 0, %s19
    %s23 = sphi 0, %s20
    %s24 = sphi 0, %s21
    %s40 = sphi 0, %s42
    %s43 = sphi 0, %s40
    %s44 = sphi 0, %s43
    %s60 = sphi 0, %s44
    %s68 = sphi 0, %s70
    %s71 = sphi 0, %s68
    %s72 = sphi 0, %s71
    %s88 = sphi 0, %s72
    %s96 = sphi 0, %s98
    %s99 = sphi 0, %s96
    %s100 = sphi 0, %s99
    %s116 = sphi 0, %s100
    %s124 = sphi 0, %s126
    %s127 = sphi 0, %s124
    %s128 = sphi 0, %s127
    %s144 = sphi 0, %s128
  $region4: #{multi_head_attention.4} parent=0 // loop_header_branch
    %12 = sbr.rel (%p10) target = $region8
  $region5: #{multi_head_attention.4} parent=0 // loop_body
    %s14 = ssub.s32 %s9, 1
    %s15 = ssub.s32 %s9, 2
    %s25 = sadd.s32 1, %s18
    %p26 = scmp.ge.s32.totalorder %s25, 1
    %s27 = scalar_select %p26, 0, %s25
    %s28 = sadd.s32 1, %s17
    %s29 = scalar_select %p26, %s28, %s17
    %p30 = scmp.ge.s32.totalorder %s29, 1
    %s31 = scalar_select %p30, 0, %s29
    %s32 = sadd.s32 1, %s16
    %s33 = scalar_select %p30, %s32, %s16
    %p34 = scmp.ge.s32.totalorder %s33, 2
    %s35 = scalar_select %p34, 0, %s33
    %s36 = ssub.s32 %s16, %s35
    %s37 = ssub.s32 %s17, %s31
    %s38 = sor.u32 %s36, %s37
    %p39 = scmp.eq.s32.totalorder %s38, 0
    %s41 = sadd.s32 %s40, 1
    %s42 = scalar_select %p39, %s40, %s41
    %p45 = pneg %p39
    %p46 = scmp.eq.s32.totalorder %s9, 1
    %p47 = por %p45, %p46
    %p48 = scmp.ne.s32.totalorder %s40, %s43
    %p49 = scmp.eq.s32.totalorder %s9, 0
    %p50 = por %p48, %p49
    %p51 = scmp.ne.s32.totalorder %s40, %s43
    %p52 = scmp.eq.s32.totalorder %s14, 1
    %p53 = por %p51, %p52
    %p54 = scmp.ne.s32.totalorder %s43, %s44
    %p55 = scmp.eq.s32.totalorder %s14, 0
    %p56 = por %p54, %p55
    %p57 = scmp.ne.s32.totalorder %s43, %s44
    %p58 = scmp.eq.s32.totalorder %s15, 1
    %p59 = por %p57, %p58
    %p61 = scmp.ne.s32.totalorder %s44, %s60
    %p62 = scmp.eq.s32.totalorder %s15, 0
    %p63 = por %p61, %p62
    %s64 = ssub.s32 %s16, %s35
    %s65 = ssub.s32 %s18, %s27
    %s66 = sor.u32 %s64, %s65
    %p67 = scmp.eq.s32.totalorder %s66, 0
    %s69 = sadd.s32 %s68, 1
    %s70 = scalar_select %p67, %s68, %s69
    %p73 = pneg %p67
    %p74 = scmp.eq.s32.totalorder %s9, 1
    %p75 = por %p73, %p74
    %p76 = scmp.ne.s32.totalorder %s68, %s71
    %p77 = scmp.eq.s32.totalorder %s9, 0
    %p78 = por %p76, %p77
    %p79 = scmp.ne.s32.totalorder %s68, %s71
    %p80 = scmp.eq.s32.totalorder %s14, 1
    %p81 = por %p79, %p80
    %p82 = scmp.ne.s32.totalorder %s71, %s72
    %p83 = scmp.eq.s32.totalorder %s14, 0
    %p84 = por %p82, %p83
    %p85 = scmp.ne.s32.totalorder %s71, %s72
    %p86 = scmp.eq.s32.totalorder %s15, 1
    %p87 = por %p85, %p86
    %p89 = scmp.ne.s32.totalorder %s72, %s88
    %p90 = scmp.eq.s32.totalorder %s15, 0
    %p91 = por %p89, %p90
    %s92 = ssub.s32 %s16, %s35
    %s93 = ssub.s32 %s18, %s27
    %s94 = sor.u32 %s92, %s93
    %p95 = scmp.eq.s32.totalorder %s94, 0
    %s97 = sadd.s32 %s96, 1
    %s98 = scalar_select %p95, %s96, %s97
    %p101 = pneg %p95
    %p102 = scmp.eq.s32.totalorder %s9, 1
    %p103 = por %p101, %p102
    %p104 = scmp.ne.s32.totalorder %s96, %s99
    %p105 = scmp.eq.s32.totalorder %s9, 0
    %p106 = por %p104, %p105
    %p107 = scmp.ne.s32.totalorder %s96, %s99
    %p108 = scmp.eq.s32.totalorder %s14, 1
    %p109 = por %p107, %p108
    %p110 = scmp.ne.s32.totalorder %s99, %s100
    %p111 = scmp.eq.s32.totalorder %s14, 0
    %p112 = por %p110, %p111
    %p113 = scmp.ne.s32.totalorder %s99, %s100
    %p114 = scmp.eq.s32.totalorder %s15, 1
    %p115 = por %p113, %p114
    %p117 = scmp.ne.s32.totalorder %s100, %s116
    %p118 = scmp.eq.s32.totalorder %s15, 0
    %p119 = por %p117, %p118
    %s120 = ssub.s32 %s16, %s35
    %s121 = ssub.s32 %s17, %s31
    %s122 = sor.u32 %s120, %s121
    %p123 = scmp.eq.s32.totalorder %s122, 0
    %s125 = sadd.s32 %s124, 1
    %s126 = scalar_select %p123, %s124, %s125
    %p129 = pneg %p123
    %p130 = scmp.eq.s32.totalorder %s9, 1
    %p131 = por %p129, %p130
    %p132 = scmp.ne.s32.totalorder %s124, %s127
    %p133 = scmp.eq.s32.totalorder %s9, 0
    %p134 = por %p132, %p133
    %p135 = scmp.ne.s32.totalorder %s124, %s127
    %p136 = scmp.eq.s32.totalorder %s14, 1
    %p137 = por %p135, %p136
    %p138 = scmp.ne.s32.totalorder %s127, %s128
    %p139 = scmp.eq.s32.totalorder %s14, 0
    %p140 = por %p138, %p139
    %p141 = scmp.ne.s32.totalorder %s127, %s128
    %p142 = scmp.eq.s32.totalorder %s15, 1
    %p143 = por %p141, %p142
    %p145 = scmp.ne.s32.totalorder %s128, %s144
    %p146 = scmp.eq.s32.totalorder %s15, 0
    %p147 = por %p145, %p146
    %p148 = scmp.le.s32.totalorder 1, %s9
    %p149 = scmp.lt.s32.totalorder %s9, 3
    %p150 = pnand %p148, %p149
    %p151 = pneg %p150
    // Predicated region
    $region9: #{multi_head_attention.4} parent=5 // pred_check
      _
    $region10: #{multi_head_attention.4} parent=5 // pred_check_branch
      %153 = sbr.rel (%p150) target = $region12
    $region11: #{multi_head_attention.4} parent=5 // pred_region
      %s154 = ssub.s32 %s9, 1
    $region12: #{multi_head_attention.4} parent=5 // pred_fallthru
      _
    %p155 = scmp.lt.s32.totalorder %s9, 2
    // Predicated region
    $region13: #{multi_head_attention.4} parent=5 // pred_check
      %p156 = pneg %p155
    $region14: #{multi_head_attention.4} parent=5 // pred_check_branch
      %158 = sbr.rel (%p156) target = $region16
    $region15: #{multi_head_attention.4} parent=5 // pred_region
      // Predicated region
      $region17: #{multi_head_attention.4} parent=15 // pred_check
        %p159 = pneg %p50
      $region18: #{multi_head_attention.4} parent=15 // pred_check_branch
        %161 = sbr.rel (%p159) target = $region20
      $region19: #{multi_head_attention.4} parent=15 // pred_region
        %p162 = scmp.lt.s32.totalorder %s16, 1
        %s163 = scalar_select %p162, %s16, 1
        %p164 = scmp.lt.s32.totalorder %s17, 0
        %s165 = scalar_select %p164, %s17, 0
        %s166 = sadd.s32 %s165, %s163
        %s167 = smul.addr %s166, 4
        %s168 = scalar_lea.vmem %s0, %s167
      $region20: #{multi_head_attention.4} parent=15 // pred_fallthru
        _
      // Predicated region
      $region21: #{multi_head_attention.4} parent=15 // pred_check
        %p169 = pneg %p78
      $region22: #{multi_head_attention.4} parent=15 // pred_check_branch
        %171 = sbr.rel (%p169) target = $region24
      $region23: #{multi_head_attention.4} parent=15 // pred_region
        %p172 = scmp.lt.s32.totalorder %s16, 1
        %s173 = scalar_select %p172, %s16, 1
        %p174 = scmp.lt.s32.totalorder %s18, 0
        %s175 = scalar_select %p174, %s18, 0
        %s176 = sadd.s32 %s175, %s173
        %s177 = smul.addr %s176, 4
        %s178 = scalar_lea.vmem %s1, %s177
      $region24: #{multi_head_attention.4} parent=15 // pred_fallthru
        _
      // Predicated region
      $region25: #{multi_head_attention.4} parent=15 // pred_check
        %p179 = pneg %p106
      $region26: #{multi_head_attention.4} parent=15 // pred_check_branch
        %181 = sbr.rel (%p179) target = $region28
      $region27: #{multi_head_attention.4} parent=15 // pred_region
        %p182 = scmp.lt.s32.totalorder %s16, 1
        %s183 = scalar_select %p182, %s16, 1
        %p184 = scmp.lt.s32.totalorder %s18, 0
        %s185 = scalar_select %p184, %s18, 0
        %s186 = sadd.s32 %s185, %s183
        %s187 = smul.addr %s186, 4
        %s188 = scalar_lea.vmem %s2, %s187
      $region28: #{multi_head_attention.4} parent=15 // pred_fallthru
        _
    $region16: #{multi_head_attention.4} parent=5 // pred_fallthru
      _
    %p189 = scmp.le.s32.totalorder 1, %s9
    %p190 = scmp.lt.s32.totalorder %s9, 3
    %p191 = pnand %p189, %p190
    %p192 = pneg %p191
    // Predicated region
    $region29: #{multi_head_attention.4} parent=5 // pred_check
      _
    $region30: #{multi_head_attention.4} parent=5 // pred_check_branch
      %194 = sbr.rel (%p191) target = $region32
    $region31: #{multi_head_attention.4} parent=5 // pred_region
      %s195 = ssub.s32 %s9, 1
      %p196 = scmp.lt.s32.totalorder %s19, 1
      %s197 = scalar_select %p196, %s19, 1
      %p198 = scmp.lt.s32.totalorder %s20, 0
      %s199 = scalar_select %p198, %s20, 0
      %s200 = sadd.s32 %s199, %s197
      %s201 = smul.addr %s200, 4
      %s202 = scalar_lea.vmem %s0, %s201
      %p203 = pneg %p56
      %p204 = pneg %p53
      %p205 = scmp.lt.s32.totalorder %s19, 1
      %s206 = scalar_select %p205, %s19, 1
      %p207 = scmp.lt.s32.totalorder %s21, 0
      %s208 = scalar_select %p207, %s21, 0
      %s209 = sadd.s32 %s208, %s206
      %s210 = smul.addr %s209, 4
      %s211 = scalar_lea.vmem %s1, %s210
      %p212 = pneg %p84
      %p213 = pneg %p81
      %p214 = scmp.lt.s32.totalorder %s19, 1
      %s215 = scalar_select %p214, %s19, 1
      %p216 = scmp.lt.s32.totalorder %s21, 0
      %s217 = scalar_select %p216, %s21, 0
      %s218 = sadd.s32 %s217, %s215
      %s219 = smul.addr %s218, 4
      %s220 = scalar_lea.vmem %s2, %s219
      %p221 = pneg %p112
      %p222 = pneg %p109
      %p223 = pneg %p140
      %p224 = pneg %p137
      %p225 = scmp.lt.s32.totalorder %s19, 1
      %s226 = scalar_select %p225, %s19, 1
      %p227 = scmp.lt.s32.totalorder %s20, 0
      %s228 = scalar_select %p227, %s20, 0
      %s229 = sadd.s32 %s228, %s226
      %s230 = smul.addr %s229, 8
      %s231 = scalar_lea.vmem %s3, %s230
      %p232 = scmp.lt.s32.totalorder %s19, 1
      %s233 = scalar_select %p232, %s19, 1
      %p234 = scmp.lt.s32.totalorder %s20, 0
      %s235 = scalar_select %p234, %s20, 0
      %s236 = sadd.s32 %s235, %s233
      %s237 = smul.addr %s236, 4
      %s238 = scalar_lea.vmem %s0, %s237
      %p239 = scmp.lt.s32.totalorder %s19, 1
      %s240 = scalar_select %p239, %s19, 1
      %p241 = scmp.lt.s32.totalorder %s21, 0
      %s242 = scalar_select %p241, %s21, 0
      %s243 = sadd.s32 %s242, %s240
      %s244 = smul.addr %s243, 4
      %s245 = scalar_lea.vmem %s1, %s244
      %p246 = scmp.lt.s32.totalorder %s19, 1
      %s247 = scalar_select %p246, %s19, 1
      %p248 = scmp.lt.s32.totalorder %s21, 0
      %s249 = scalar_select %p248, %s21, 0
      %s250 = sadd.s32 %s249, %s247
      %s251 = smul.addr %s250, 4
      %s252 = scalar_lea.vmem %s2, %s251
      %p253 = scmp.lt.s32.totalorder %s19, 1
      %s254 = scalar_select %p253, %s19, 1
      %p255 = scmp.lt.s32.totalorder %s20, 0
      %s256 = scalar_select %p255, %s20, 0
      %s257 = sadd.s32 %s256, %s254
      %s258 = smul.addr %s257, 8
      %s259 = scalar_lea.vmem %s3, %s258
      %p261 = scmp.eq.s32.totalorder %s21, 0
      // Predicated region
      $region33: #{multi_head_attention.4} parent=31 // pred_check
        %p262 = pneg %p261
      $region34: #{multi_head_attention.4} parent=31 // pred_check_branch
        %264 = sbr.rel (%p262) target = $region36
      $region35: #{multi_head_attention.4} parent=31 // pred_region
        %vm265 = vcmask 7168
        %266 = vst.msk [vmem:[#allocation2] sm:$0xff] %vm265, -inf
        %267 = vst.msk [vmem:[#allocation2 + $0x8] sm:$0xff] %vm265, -inf
        %268 = vst.msk [vmem:[#allocation2 + $0x10] sm:$0xff] %vm265, -inf
        %269 = vst.msk [vmem:[#allocation2 + $0x18] sm:$0xff] %vm265, -inf
        %270 = vst.msk [vmem:[#allocation3] sm:$0xff] %vm265, 0.0
        %271 = vst.msk [vmem:[#allocation3 + $0x8] sm:$0xff] %vm265, 0.0
        %272 = vst.msk [vmem:[#allocation3 + $0x10] sm:$0xff] %vm265, 0.0
        %273 = vst.msk [vmem:[#allocation3 + $0x18] sm:$0xff] %vm265, 0.0
        %vm274 = vcmask 64512
        %275 = vst.msk [vmem:[#allocation4] sm:$0xff] %vm274, 0.0
        %276 = vst.msk [vmem:[#allocation4 + $0x8] sm:$0xff] %vm274, 0.0
        %277 = vst.msk [vmem:[#allocation4 + $0x10] sm:$0xff] %vm274, 0.0
        %278 = vst.msk [vmem:[#allocation4 + $0x18] sm:$0xff] %vm274, 0.0
      $region36: #{multi_head_attention.4} parent=31 // pred_fallthru
        _
      %v279 = vld [vmem:[%s238] sm:$0xf]
      %v280 = vld [vmem:[%s245] sm:$0xf]
      %v281 = vld [vmem:[%s252] sm:$0xf]
      %vm282 = vcmask 64512
      %v284 = vsel %vm282, %v279, 0
      %v287 = vsel %vm282, %v280, 0
      %289 = vmatpush.bf16.xpose.msra.mxu0 0
      %290 = vmatpush.bf16.xpose.msra.mxu0 0
      %291 = vmatpush.bf16.xpose.msra.mxu0 0
      %292 = vmatpush.bf16.xpose.msra.mxu0 0
      %293 = vmatpush.bf16.xpose.msra.mxu0 0
      %294 = vmatpush.bf16.xpose.msra.mxu0 0
      %295 = vmatpush.bf16.xpose.msra.mxu0 0
      %296 = vmatpush.bf16.xpose.msra.mxu0 %v287
      %297 = vmatmul.bf16.gmra.mxu0 %v284
      %v298 = vpop.f32.mrf.mxu0
      %v299 = vadd.f32 0.0, %v298
      %v300 = vpop.f32.mrf.mxu0
      %301 = vdwg.mxu0
      %v302 = vld [vmem:[#allocation2] sm:$0xff]
      %v303 = vsel %vm282, %v299, -inf
      %304 = vmax.xlane.f32.xlu0 %v303
      %v305 = vpop.xlane.xlu0 %304
      %v306 = vmax.f32 %v302, %v305
      %v307 = vsub.f32 %v302, %v306
      %v308 = vmul.f32 %v307, 1.442695
      %v309 = vpow.pop %v308
      %311 = vset.pattern.permute.xlu0 0
      %312 = vperm.xlu0 %311, %v306
      %v313 = vpop.permute.xlu0 %312
      %v315 = vsub.f32 %v299, %v313
      %v316 = vmul.f32 %v315, 1.442695
      %v317 = vpow.pop %v316
      %v318 = vld [vmem:[#allocation3] sm:$0xff]
      %v319 = vmul.f32 %v309, %v318
      %v320 = vsel %vm282, %v317, 0.0
      %321 = vadd.xlane.f32.xlu0 %v320
      %v322 = vpop.xlane.xlu0 %321
      %v323 = vadd.f32 %v319, %v322
      %vm324 = vcmask 7168
      %325 = vst.msk [vmem:[#allocation3] sm:$0xff] %vm324, %v323
      %v326 = vld [vmem:[#allocation4] sm:$0xff]
      %328 = vset.pattern.permute.xlu0 0
      %329 = vperm.xlu0 %328, %v309
      %v330 = vpop.permute.xlu0 %329
      %v332 = vmul.f32 %v330, %v326
      %v333 = vpack.c.bf16 %v317, %v317
      %v335 = vsel %vm282, %v333, 0
      %vm337 = vcmask 1043456
      %v339 = vsel %vm337, %v281, 0
      %341 = vmatpush.bf16.msra.mxu0 0
      %342 = vmatpush.bf16.msra.mxu0 0
      %343 = vmatpush.bf16.msra.mxu0 0
      %344 = vmatpush.bf16.msra.mxu0 0
      %345 = vmatpush.bf16.msra.mxu0 0
      %346 = vmatpush.bf16.msra.mxu0 0
      %347 = vmatpush.bf16.msra.mxu0 0
      %348 = vmatpush.bf16.msra.mxu0 %v339
      %349 = vmatmul.bf16.gmra.mxu0 %v335
      %v350 = vpop.f32.mrf.mxu0
      %v351 = vadd.f32 0.0, %v350
      %v352 = vpop.f32.mrf.mxu0
      %353 = vdwg.mxu0
      %v354 = vadd.f32 %v332, %v351
      %355 = vst.msk [vmem:[#allocation4] sm:$0xff] %vm282, %v354
      %356 = vst.msk [vmem:[#allocation2] sm:$0xff] %vm324, %v306
      %v357 = vld [vmem:[%s238] sm:$0xf]
      %v358 = vld [vmem:[%s245] sm:$0xf]
      %v359 = vld [vmem:[%s252] sm:$0xf]
      %v361 = vunpack.c.l.b16 %v357
      %v362 = vpack.c.b16 %v361, %v361
      %363 = vrot.lane.b32.xlu0 %v362, 120
      %v364 = vpop.permute.xlu0 %363
      %v366 = vunpack.c.l.b16 %v358
      %v367 = vpack.c.b16 %v366, %v366
      %368 = vrot.lane.b32.xlu0 %v367, 120
      %v369 = vpop.permute.xlu0 %368
      %v371 = vsel %vm282, %v364, 0
      %v374 = vsel %vm282, %v369, 0
      %376 = vmatpush.bf16.xpose.msra.mxu0 0
      %377 = vmatpush.bf16.xpose.msra.mxu0 0
      %378 = vmatpush.bf16.xpose.msra.mxu0 0
      %379 = vmatpush.bf16.xpose.msra.mxu0 0
      %380 = vmatpush.bf16.xpose.msra.mxu0 0
      %381 = vmatpush.bf16.xpose.msra.mxu0 0
      %382 = vmatpush.bf16.xpose.msra.mxu0 0
      %383 = vmatpush.bf16.xpose.msra.mxu0 %v374
      %384 = vmatmul.bf16.gmra.mxu0 %v371
      %v385 = vpop.f32.mrf.mxu0
      %v386 = vadd.f32 0.0, %v385
      %v387 = vpop.f32.mrf.mxu0
      %388 = vdwg.mxu0
      %s389 = scalar_lea.vmem [#allocation2], 8
      %v390 = vld [vmem:[%s389] sm:$0xff]
      %v391 = vsel %vm282, %v386, -inf
      %392 = vmax.xlane.f32.xlu0 %v391
      %v393 = vpop.xlane.xlu0 %392
      %v394 = vmax.f32 %v390, %v393
      %v395 = vsub.f32 %v390, %v394
      %v396 = vmul.f32 %v395, 1.442695
      %v397 = vpow.pop %v396
      %399 = vset.pattern.permute.xlu0 0
      %400 = vperm.xlu0 %399, %v394
      %v401 = vpop.permute.xlu0 %400
      %v403 = vsub.f32 %v386, %v401
      %v404 = vmul.f32 %v403, 1.442695
      %v405 = vpow.pop %v404
      %s406 = scalar_lea.vmem [#allocation3], 8
      %v407 = vld [vmem:[%s406] sm:$0xff]
      %v408 = vmul.f32 %v397, %v407
      %v409 = vsel %vm282, %v405, 0.0
      %410 = vadd.xlane.f32.xlu0 %v409
      %v411 = vpop.xlane.xlu0 %410
      %v412 = vadd.f32 %v408, %v411
      %413 = vst.msk [vmem:[%s406] sm:$0xff] %vm324, %v412
      %s414 = scalar_lea.vmem [#allocation4], 8
      %v415 = vld [vmem:[%s414] sm:$0xff]
      %417 = vset.pattern.permute.xlu0 0
      %418 = vperm.xlu0 %417, %v397
      %v419 = vpop.permute.xlu0 %418
      %v421 = vmul.f32 %v419, %v415
      %v422 = vpack.c.bf16 %v405, %v405
      %v424 = vunpack.c.l.b16 %v359
      %v425 = vpack.c.b16 %v424, %v424
      %426 = vrot.lane.b32.xlu0 %v425, 120
      %v427 = vpop.permute.xlu0 %426
      %v429 = vsel %vm282, %v422, 0
      %v432 = vsel %vm337, %v427, 0
      %434 = vmatpush.bf16.msra.mxu0 0
      %435 = vmatpush.bf16.msra.mxu0 0
      %436 = vmatpush.bf16.msra.mxu0 0
      %437 = vmatpush.bf16.msra.mxu0 0
      %438 = vmatpush.bf16.msra.mxu0 0
      %439 = vmatpush.bf16.msra.mxu0 0
      %440 = vmatpush.bf16.msra.mxu0 0
      %441 = vmatpush.bf16.msra.mxu0 %v432
      %442 = vmatmul.bf16.gmra.mxu0 %v429
      %v443 = vpop.f32.mrf.mxu0
      %v444 = vadd.f32 0.0, %v443
      %v445 = vpop.f32.mrf.mxu0
      %446 = vdwg.mxu0
      %v447 = vadd.f32 %v421, %v444
      %448 = vst.msk [vmem:[%s414] sm:$0xff] %vm282, %v447
      %449 = vst.msk [vmem:[%s389] sm:$0xff] %vm324, %v394
      %v450 = vld [vmem:[%s238] sm:$0xf]
      %v451 = vld [vmem:[%s245] sm:$0xf]
      %v452 = vld [vmem:[%s252] sm:$0xf]
      %v454 = vunpack.c.l.b16 %v450
      %v455 = vpack.c.b16 %v454, %v454
      %456 = vrot.lane.b32.xlu0 %v455, 112
      %v457 = vpop.permute.xlu0 %456
      %v459 = vunpack.c.l.b16 %v451
      %v460 = vpack.c.b16 %v459, %v459
      %461 = vrot.lane.b32.xlu0 %v460, 112
      %v462 = vpop.permute.xlu0 %461
      %v464 = vsel %vm282, %v457, 0
      %v467 = vsel %vm282, %v462, 0
      %469 = vmatpush.bf16.xpose.msra.mxu0 0
      %470 = vmatpush.bf16.xpose.msra.mxu0 0
      %471 = vmatpush.bf16.xpose.msra.mxu0 0
      %472 = vmatpush.bf16.xpose.msra.mxu0 0
      %473 = vmatpush.bf16.xpose.msra.mxu0 0
      %474 = vmatpush.bf16.xpose.msra.mxu0 0
      %475 = vmatpush.bf16.xpose.msra.mxu0 0
      %476 = vmatpush.bf16.xpose.msra.mxu0 %v467
      %477 = vmatmul.bf16.gmra.mxu0 %v464
      %v478 = vpop.f32.mrf.mxu0
      %v479 = vadd.f32 0.0, %v478
      %v480 = vpop.f32.mrf.mxu0
      %481 = vdwg.mxu0
      %s482 = scalar_lea.vmem [#allocation2], 16
      %v483 = vld [vmem:[%s482] sm:$0xff]
      %v484 = vsel %vm282, %v479, -inf
      %485 = vmax.xlane.f32.xlu0 %v484
      %v486 = vpop.xlane.xlu0 %485
      %v487 = vmax.f32 %v483, %v486
      %v488 = vsub.f32 %v483, %v487
      %v489 = vmul.f32 %v488, 1.442695
      %v490 = vpow.pop %v489
      %492 = vset.pattern.permute.xlu0 0
      %493 = vperm.xlu0 %492, %v487
      %v494 = vpop.permute.xlu0 %493
      %v496 = vsub.f32 %v479, %v494
      %v497 = vmul.f32 %v496, 1.442695
      %v498 = vpow.pop %v497
      %s499 = scalar_lea.vmem [#allocation3], 16
      %v500 = vld [vmem:[%s499] sm:$0xff]
      %v501 = vmul.f32 %v490, %v500
      %v502 = vsel %vm282, %v498, 0.0
      %503 = vadd.xlane.f32.xlu0 %v502
      %v504 = vpop.xlane.xlu0 %503
      %v505 = vadd.f32 %v501, %v504
      %506 = vst.msk [vmem:[%s499] sm:$0xff] %vm324, %v505
      %s507 = scalar_lea.vmem [#allocation4], 16
      %v508 = vld [vmem:[%s507] sm:$0xff]
      %510 = vset.pattern.permute.xlu0 0
      %511 = vperm.xlu0 %510, %v490
      %v512 = vpop.permute.xlu0 %511
      %v514 = vmul.f32 %v512, %v508
      %v515 = vpack.c.bf16 %v498, %v498
      %v517 = vunpack.c.l.b16 %v452
      %v518 = vpack.c.b16 %v517, %v517
      %519 = vrot.lane.b32.xlu0 %v518, 112
      %v520 = vpop.permute.xlu0 %519
      %v522 = vsel %vm282, %v515, 0
      %v525 = vsel %vm337, %v520, 0
      %527 = vmatpush.bf16.msra.mxu0 0
      %528 = vmatpush.bf16.msra.mxu0 0
      %529 = vmatpush.bf16.msra.mxu0 0
      %530 = vmatpush.bf16.msra.mxu0 0
      %531 = vmatpush.bf16.msra.mxu0 0
      %532 = vmatpush.bf16.msra.mxu0 0
      %533 = vmatpush.bf16.msra.mxu0 0
      %534 = vmatpush.bf16.msra.mxu0 %v525
      %535 = vmatmul.bf16.gmra.mxu0 %v522
      %v536 = vpop.f32.mrf.mxu0
      %v537 = vadd.f32 0.0, %v536
      %v538 = vpop.f32.mrf.mxu0
      %539 = vdwg.mxu0
      %v540 = vadd.f32 %v514, %v537
      %541 = vst.msk [vmem:[%s507] sm:$0xff] %vm282, %v540
      %542 = vst.msk [vmem:[%s482] sm:$0xff] %vm324, %v487
      %v543 = vld [vmem:[%s238] sm:$0xf]
      %v544 = vld [vmem:[%s245] sm:$0xf]
      %v545 = vld [vmem:[%s252] sm:$0xf]
      %v547 = vunpack.c.l.b16 %v543
      %v548 = vpack.c.b16 %v547, %v547
      %549 = vrot.lane.b32.xlu0 %v548, 104
      %v550 = vpop.permute.xlu0 %549
      %v552 = vunpack.c.l.b16 %v544
      %v553 = vpack.c.b16 %v552, %v552
      %554 = vrot.lane.b32.xlu0 %v553, 104
      %v555 = vpop.permute.xlu0 %554
      %v557 = vsel %vm282, %v550, 0
      %v560 = vsel %vm282, %v555, 0
      %562 = vmatpush.bf16.xpose.msra.mxu0 0
      %563 = vmatpush.bf16.xpose.msra.mxu0 0
      %564 = vmatpush.bf16.xpose.msra.mxu0 0
      %565 = vmatpush.bf16.xpose.msra.mxu0 0
      %566 = vmatpush.bf16.xpose.msra.mxu0 0
      %567 = vmatpush.bf16.xpose.msra.mxu0 0
      %568 = vmatpush.bf16.xpose.msra.mxu0 0
      %569 = vmatpush.bf16.xpose.msra.mxu0 %v560
      %570 = vmatmul.bf16.gmra.mxu0 %v557
      %v571 = vpop.f32.mrf.mxu0
      %v572 = vadd.f32 0.0, %v571
      %v573 = vpop.f32.mrf.mxu0
      %574 = vdwg.mxu0
      %s575 = scalar_lea.vmem [#allocation2], 24
      %v576 = vld [vmem:[%s575] sm:$0xff]
      %v577 = vsel %vm282, %v572, -inf
      %578 = vmax.xlane.f32.xlu0 %v577
      %v579 = vpop.xlane.xlu0 %578
      %v580 = vmax.f32 %v576, %v579
      %v581 = vsub.f32 %v576, %v580
      %v582 = vmul.f32 %v581, 1.442695
      %v583 = vpow.pop %v582
      %585 = vset.pattern.permute.xlu0 0
      %586 = vperm.xlu0 %585, %v580
      %v587 = vpop.permute.xlu0 %586
      %v589 = vsub.f32 %v572, %v587
      %v590 = vmul.f32 %v589, 1.442695
      %v591 = vpow.pop %v590
      %s592 = scalar_lea.vmem [#allocation3], 24
      %v593 = vld [vmem:[%s592] sm:$0xff]
      %v594 = vmul.f32 %v583, %v593
      %v595 = vsel %vm282, %v591, 0.0
      %596 = vadd.xlane.f32.xlu0 %v595
      %v597 = vpop.xlane.xlu0 %596
      %v598 = vadd.f32 %v594, %v597
      %599 = vst.msk [vmem:[%s592] sm:$0xff] %vm324, %v598
      %s600 = scalar_lea.vmem [#allocation4], 24
      %v601 = vld [vmem:[%s600] sm:$0xff]
      %603 = vset.pattern.permute.xlu0 0
      %604 = vperm.xlu0 %603, %v583
      %v605 = vpop.permute.xlu0 %604
      %v607 = vmul.f32 %v605, %v601
      %v608 = vpack.c.bf16 %v591, %v591
      %v610 = vunpack.c.l.b16 %v545
      %v611 = vpack.c.b16 %v610, %v610
      %612 = vrot.lane.b32.xlu0 %v611, 104
      %v613 = vpop.permute.xlu0 %612
      %v615 = vsel %vm282, %v608, 0
      %v618 = vsel %vm337, %v613, 0
      %620 = vmatpush.bf16.msra.mxu0 0
      %621 = vmatpush.bf16.msra.mxu0 0
      %622 = vmatpush.bf16.msra.mxu0 0
      %623 = vmatpush.bf16.msra.mxu0 0
      %624 = vmatpush.bf16.msra.mxu0 0
      %625 = vmatpush.bf16.msra.mxu0 0
      %626 = vmatpush.bf16.msra.mxu0 0
      %627 = vmatpush.bf16.msra.mxu0 %v618
      %628 = vmatmul.bf16.gmra.mxu0 %v615
      %v629 = vpop.f32.mrf.mxu0
      %v630 = vadd.f32 0.0, %v629
      %v631 = vpop.f32.mrf.mxu0
      %632 = vdwg.mxu0
      %v633 = vadd.f32 %v607, %v630
      %634 = vst.msk [vmem:[%s600] sm:$0xff] %vm282, %v633
      %635 = vst.msk [vmem:[%s575] sm:$0xff] %vm324, %v580
      // Predicated region
      $region37: #{multi_head_attention.4} parent=31 // pred_check
        %p636 = pneg %p261
      $region38: #{multi_head_attention.4} parent=31 // pred_check_branch
        %638 = sbr.rel (%p636) target = $region40
      $region39: #{multi_head_attention.4} parent=31 // pred_region
        %v639 = vld [vmem:[#allocation3] sm:$0xff]
        %v640 = vrcp.pop %v639
        %v641 = vld [vmem:[#allocation4] sm:$0xff]
        %643 = vset.pattern.permute.xlu0 0
        %644 = vperm.xlu0 %643, %v640
        %v645 = vpop.permute.xlu0 %644
        %v647 = vmul.f32 %v641, %v645
        %648 = vst.msk [vmem:[%s259] sm:$0xff] %vm282, %v647
        %v649 = vld [vmem:[%s406] sm:$0xff]
        %v650 = vrcp.pop %v649
        %v651 = vld [vmem:[%s414] sm:$0xff]
        %653 = vset.pattern.permute.xlu0 0
        %654 = vperm.xlu0 %653, %v650
        %v655 = vpop.permute.xlu0 %654
        %v657 = vmul.f32 %v651, %v655
        %659 = vrot.lane.b32.xlu0 %v657, 8
        %v660 = vpop.permute.xlu0 %659
        %vm662 = vcmask 130112
        %663 = vst.msk [vmem:[%s259] sm:$0xff] %vm662, %v660
        %v664 = vld [vmem:[%s499] sm:$0xff]
        %v665 = vrcp.pop %v664
        %v666 = vld [vmem:[%s507] sm:$0xff]
        %668 = vset.pattern.permute.xlu0 0
        %669 = vperm.xlu0 %668, %v665
        %v670 = vpop.permute.xlu0 %669
        %v672 = vmul.f32 %v666, %v670
        %674 = vrot.lane.b32.xlu0 %v672, 16
        %v675 = vpop.permute.xlu0 %674
        %vm677 = vcmask 195712
        %678 = vst.msk [vmem:[%s259] sm:$0xff] %vm677, %v675
        %v679 = vld [vmem:[%s592] sm:$0xff]
        %v680 = vrcp.pop %v679
        %v681 = vld [vmem:[%s600] sm:$0xff]
        %683 = vset.pattern.permute.xlu0 0
        %684 = vperm.xlu0 %683, %v680
        %v685 = vpop.permute.xlu0 %684
        %v687 = vmul.f32 %v681, %v685
        %689 = vrot.lane.b32.xlu0 %v687, 24
        %v690 = vpop.permute.xlu0 %689
        %vm692 = vcmask 261312
        %693 = vst.msk [vmem:[%s259] sm:$0xff] %vm692, %v690
      $region40: #{multi_head_attention.4} parent=31 // pred_fallthru
        _
      %p694 = scmp.lt.s32.totalorder %s19, 1
      %s695 = scalar_select %p694, %s19, 1
      %p696 = scmp.lt.s32.totalorder %s20, 0
      %s697 = scalar_select %p696, %s20, 0
      %s698 = sadd.s32 %s697, %s695
      %s699 = smul.addr %s698, 8
      %s700 = scalar_lea.vmem %s3, %s699
      // Predicated region
      $region41: #{multi_head_attention.4} parent=31 // pred_check
        %p701 = pneg %p137
      $region42: #{multi_head_attention.4} parent=31 // pred_check_branch
        %703 = sbr.rel (%p701) target = $region44
      $region43: #{multi_head_attention.4} parent=31 // pred_region
        _
      $region44: #{multi_head_attention.4} parent=31 // pred_fallthru
        _
    $region32: #{multi_head_attention.4} parent=5 // pred_fallthru
      _
    %p704 = scmp.le.s32.totalorder 2, %s9
    // Predicated region
    $region45: #{multi_head_attention.4} parent=5 // pred_check
      %p705 = pneg %p704
    $region46: #{multi_head_attention.4} parent=5 // pred_check_branch
      %707 = sbr.rel (%p705) target = $region48
    $region47: #{multi_head_attention.4} parent=5 // pred_region
      %s708 = ssub.s32 %s9, 2
      // Predicated region
      $region49: #{multi_head_attention.4} parent=47 // pred_check
        %p709 = pneg %p143
      $region50: #{multi_head_attention.4} parent=47 // pred_check_branch
        %711 = sbr.rel (%p709) target = $region52
      $region51: #{multi_head_attention.4} parent=47 // pred_region
        %p712 = scmp.lt.s32.totalorder %s22, 1
        %s713 = scalar_select %p712, %s22, 1
        %p714 = scmp.lt.s32.totalorder %s23, 0
        %s715 = scalar_select %p714, %s23, 0
        %s716 = sadd.s32 %s715, %s713
        %s717 = smul.addr %s716, 8
        %s718 = scalar_lea.vmem %s3, %s717
      $region52: #{multi_head_attention.4} parent=47 // pred_fallthru
        _
    $region48: #{multi_head_attention.4} parent=5 // pred_fallthru
      _
  $region6: #{multi_head_attention.4} parent=0 // loop_footer
    %s13 = sadd.s32 1, %s9
  $region7: #{multi_head_attention.4} parent=0 // loop_footer_branch
    %8 = sbr.rel target = $region3
  $region8: #{multi_head_attention.4} parent=0 // loop_exit
    _

</llo_original>
